<compile_context>
chip_gen: v7x
topology: tpu7x:2x2x1
jax: 0.10.0
libtpu: 0.0.40
codegen_flags: <defaults>
</compile_context>

<pallas_src>
import functools

import jax
import jax.numpy as jnp
from jax.experimental import pallas as pl
from jax.experimental.pallas import tpu as pltpu

_SQRT_HALF = 0.7071067811865476
_LN_EPS = 1e-5


def _exact_gelu(x):
    # nn.GELU() default (exact erf form)
    return 0.5 * x * (1.0 + jax.lax.erf(x * _SQRT_HALF))


def _fusion_kernel(x1_ref, x2_ref,
                   wih1_ref, whh1_ref, b1_ref,
                   wih2_ref, whh2_ref, b2_ref,
                   ln_g1_ref, ln_b1_ref, ln_g2_ref, ln_b2_ref,
                   w_fc1a_ref, w_fc1b_ref, b_fc1_ref,
                   w_fc2_ref, b_fc2_ref, ramp_ref,
                   out_ref, *, k1, k2, B, D):
    wdt = wih1_ref.dtype  # weight compute dtype (bf16 or f32); accum is f32

    # ---- hoisted, non-recurrent input projections (bias folded in once) ----
    gx1 = jnp.dot(x1_ref[...].astype(wdt), wih1_ref[...],
                  preferred_element_type=jnp.float32) + b1_ref[...]   # (k1*B, 4D)
    gx2 = jnp.dot(x2_ref[...].astype(wdt), wih2_ref[...],
                  preferred_element_type=jnp.float32) + b2_ref[...]   # (k2*B, 4D)
    whh1 = whh1_ref[...]
    whh2 = whh2_ref[...]

    def step(gx_t, h, c, whh, first):
        # torch.nn.LSTMCell; gate order i, f, g, o; fused bias already in gx_t.
        if first:
            gates = gx_t                               # h == 0 exactly at t == 0
        else:
            gates = gx_t + jnp.dot(h.astype(whh.dtype), whh,
                                   preferred_element_type=jnp.float32)
        i = jax.nn.sigmoid(gates[:, 0 * D:1 * D])
        f = jax.nn.sigmoid(gates[:, 1 * D:2 * D])
        g = jnp.tanh(gates[:, 2 * D:3 * D])
        o = jax.nn.sigmoid(gates[:, 3 * D:4 * D])
        c_new = f * c + i * g
        h_new = o * jnp.tanh(c_new)
        return h_new, c_new

    h1 = jnp.zeros((B, D), jnp.float32)
    c1 = jnp.zeros((B, D), jnp.float32)
    h2 = jnp.zeros((B, D), jnp.float32)
    c2 = jnp.zeros((B, D), jnp.float32)

    # Interleave the two independent chains (static unroll; k is tiny & known).
    for t in range(max(k1, k2)):
        if t < k1:
            h1, c1 = step(gx1[t * B:(t + 1) * B, :], h1, c1, whh1, t == 0)
        if t < k2:
            h2, c2 = step(gx2[t * B:(t + 1) * B, :], h2, c2, whh2, t == 0)

    # ---- LayerNorm over concat([h1, h2]) without the lane-axis concat ------
    inv_n = 1.0 / (2 * D)
    mean = (jnp.sum(h1, axis=-1, keepdims=True)
            + jnp.sum(h2, axis=-1, keepdims=True)) * inv_n
    d1 = h1 - mean
    d2 = h2 - mean
    var = (jnp.sum(d1 * d1, axis=-1, keepdims=True)
           + jnp.sum(d2 * d2, axis=-1, keepdims=True)) * inv_n
    rstd = jax.lax.rsqrt(var + _LN_EPS)
    xn1 = d1 * rstd * ln_g1_ref[...] + ln_b1_ref[...]
    xn2 = d2 * rstd * ln_g2_ref[...] + ln_b2_ref[...]

    # ---- MLP head (no residual): fc1 (split) -> GELU -> fc2 ----------------
    y = (jnp.dot(xn1.astype(wdt), w_fc1a_ref[...],
                 preferred_element_type=jnp.float32)
         + jnp.dot(xn2.astype(wdt), w_fc1b_ref[...],
                   preferred_element_type=jnp.float32)
         + b_fc1_ref[...])
    y = _exact_gelu(y)
    y = jnp.dot(y.astype(wdt), w_fc2_ref[...],
                preferred_element_type=jnp.float32) + b_fc2_ref[...]   # (B, D)

    # ---- fused ramp multiply, lane-dense (B, S, D) store --------------------
    out_ref[...] = y[:, None, :] * ramp_ref[...][None, :, :]


def dual_lstm_global_fusion(global_embeds, params, ramp=None,
                            *, weight_dtype=jnp.bfloat16):
    """global_embeds: (B, 2k-1, 1, D); ramp: (S, 1) or None.

    Returns (B, S, D) if ramp is given, else (B, 1, D).
    """
    B, T, _, D = global_embeds.shape
    x = global_embeds[:, :, 0, :].astype(jnp.float32)             # (B, T, D)

    idx1 = [0] + list(range(1, T, 2))
    idx2 = [0] + list(range(2, T, 2))
    k1, k2 = len(idx1), len(idx2)
    # Time-major, flattened to (k*B, D): lets the kernel hoist the whole input
    # projection of each chain into one matmul.
    x1 = jnp.transpose(x[:, jnp.array(idx1), :], (1, 0, 2)).reshape(k1 * B, D)
    x2 = jnp.transpose(x[:, jnp.array(idx2), :], (1, 0, 2)).reshape(k2 * B, D)

    if ramp is None:
        ramp_arr = jnp.ones((1, 1), jnp.float32)
    else:
        ramp_arr = ramp.astype(jnp.float32)
    S = ramp_arr.shape[0]

    wdt = weight_dtype
    w_fc1 = params["w_fc1"]
    inputs = (
        x1, x2,
        params["w_ih1"].astype(wdt), params["w_hh1"].astype(wdt),
        params["b1"].astype(jnp.float32),
        params["w_ih2"].astype(wdt), params["w_hh2"].astype(wdt),
        params["b2"].astype(jnp.float32),
        params["ln_g"][:, :D].astype(jnp.float32),
        params["ln_b"][:, :D].astype(jnp.float32),
        params["ln_g"][:, D:].astype(jnp.float32),
        params["ln_b"][:, D:].astype(jnp.float32),
        w_fc1[:D, :].astype(wdt), w_fc1[D:, :].astype(wdt),
        params["b_fc1"].astype(jnp.float32),
        params["w_fc2"].astype(wdt), params["b_fc2"].astype(jnp.float32),
        ramp_arr,
    )

    # Roofline hints + scoped-VMEM raise (default scoped limit is the first
    # hard wall at production D=1024; capped so bf16 weights still fit v7x).
    arg_bytes = sum(int(a.size) * a.dtype.itemsize for a in inputs)
    out_bytes = B * S * D * 4
    vmem_limit = int(min(max(arg_bytes + out_bytes + (8 << 20), 32 << 20),
                         100 << 20))
    flops = 2 * (k1 + k2) * B * D * 4 * D                 # hoisted input proj
    flops += 2 * ((k1 - 1) + (k2 - 1)) * B * D * 4 * D    # recurrent matmuls
    flops += 2 * B * (2 * D) * D + 2 * B * D * D          # fc1 (split) + fc2
    transcendentals = (k1 + k2) * B * 5 * D + B * D

    vmem = pl.BlockSpec(memory_space=pltpu.MemorySpace.VMEM)
    kernel = functools.partial(_fusion_kernel, k1=k1, k2=k2, B=B, D=D)

    out = pl.pallas_call(
        kernel,
        out_shape=jax.ShapeDtypeStruct((B, S, D), jnp.float32),
        in_specs=[vmem] * len(inputs),
        out_specs=vmem,
        compiler_params=pltpu.CompilerParams(vmem_limit_bytes=vmem_limit),
        cost_estimate=pl.CostEstimate(
            flops=int(flops),
            transcendentals=int(transcendentals),
            bytes_accessed=int(arg_bytes + out_bytes)),
    )(*inputs)
    return out


def _reference(global_embeds, params, ramp=None):
    """Pure-JAX (f32) reference of the PyTorch forward, for verification."""
    B, T, _, D = global_embeds.shape
    x = global_embeds[:, :, 0, :]
    idx1 = [0] + list(range(1, T, 2))
    idx2 = [0] + list(range(2, T, 2))

    def run(idxs, w_ih, w_hh, b):
        h = jnp.zeros((B, D), jnp.float32)
        c = jnp.zeros((B, D), jnp.float32)
        for i in idxs:
            xt = x[:, i, :]
            gates = xt @ w_ih + h @ w_hh + b
            ii = jax.nn.sigmoid(gates[:, 0 * D:1 * D])
            ff = jax.nn.sigmoid(gates[:, 1 * D:2 * D])
            gg = jnp.tanh(gates[:, 2 * D:3 * D])
            oo = jax.nn.sigmoid(gates[:, 3 * D:4 * D])
            c = ff * c + ii * gg
            h = oo * jnp.tanh(c)
        return h

    h1 = run(idx1, params["w_ih1"], params["w_hh1"], params["b1"])
    h2 = run(idx2, params["w_ih2"], params["w_hh2"], params["b2"])
    h = jnp.concatenate([h1, h2], axis=-1)
    mean = jnp.mean(h, axis=-1, keepdims=True)
    var = jnp.mean((h - mean) ** 2, axis=-1, keepdims=True)
    xn = (h - mean) * jax.lax.rsqrt(var + _LN_EPS)
    xn = xn * params["ln_g"] + params["ln_b"]
    y = _exact_gelu(xn @ params["w_fc1"] + params["b_fc1"])
    y = y @ params["w_fc2"] + params["b_fc2"]
    y = y[:, None, :]
    return y if ramp is None else y * ramp


def make_params(key, D):
    ks = jax.random.split(key, 8)
    s = 0.02
    return {
        "w_ih1": s * jax.random.normal(ks[0], (D, 4 * D), jnp.float32),
        "w_hh1": s * jax.random.normal(ks[1], (D, 4 * D), jnp.float32),
        "b1": s * jax.random.normal(ks[2], (1, 4 * D), jnp.float32),
        "w_ih2": s * jax.random.normal(ks[3], (D, 4 * D), jnp.float32),
        "w_hh2": s * jax.random.normal(ks[4], (D, 4 * D), jnp.float32),
        "b2": s * jax.random.normal(ks[5], (1, 4 * D), jnp.float32),
        "ln_g": jnp.ones((1, 2 * D), jnp.float32),
        "ln_b": jnp.zeros((1, 2 * D), jnp.float32),
        "w_fc1": s * jax.random.normal(ks[6], (2 * D, D), jnp.float32),
        "b_fc1": jnp.zeros((1, D), jnp.float32),
        "w_fc2": s * jax.random.normal(ks[7], (D, D), jnp.float32),
        "b_fc2": jnp.zeros((1, D), jnp.float32),
    }


if __name__ == "__main__":
    key = jax.random.PRNGKey(0)
    k_x, k_r, k_p = jax.random.split(key, 3)

    B, D = 2, 128          # embed_dim (small stand-in for 1024)
    T = 5                  # 2k-1 with k=3
    S = 8                  # small stand-in for the 77-token ramp

    global_embeds = jax.random.normal(k_x, (B, T, 1, D), jnp.float32)
    ramp = jax.random.uniform(k_r, (S, 1), jnp.float32)
    params = make_params(k_p, D)

    ref = _reference(global_embeds, params, ramp=ramp)

    # f32-weight path: tight structural check against the reference.
    out_f32 = jax.block_until_ready(
        dual_lstm_global_fusion(global_embeds, params, ramp=ramp,
                                weight_dtype=jnp.float32))
    assert out_f32.shape == (B, S, D)
    assert float(jnp.max(jnp.abs(out_f32 - ref))) < 1e-4, "f32 mismatch vs reference"

    # Default bf16-weight path (production config: halves HBM weight traffic,
    # fits v7x VMEM at D=1024).  f32 accumulation keeps it within tolerance.
    out = jax.block_until_ready(
        dual_lstm_global_fusion(global_embeds, params, ramp=ramp))
    assert out.shape == (B, S, D)
    assert float(jnp.max(jnp.abs(out - ref))) < 5e-3, "bf16 mismatch vs reference"

    # ramp=None path keeps the (B, 1, D) module output shape.
    out_no_ramp = jax.block_until_ready(
        dual_lstm_global_fusion(global_embeds, params, ramp=None))
    assert out_no_ramp.shape == (B, 1, D)

    print("KERNEL_OK")
</pallas_src>

<mosaic_0001>
module attributes {stable_mosaic.version = 11 : i64} {
  func.func @_fusion_kernel(%arg0: memref<6x128xf32, #tpu.memory_space<vmem>>, %arg1: memref<6x128xf32, #tpu.memory_space<vmem>>, %arg2: memref<128x512xf32, #tpu.memory_space<vmem>>, %arg3: memref<128x512xf32, #tpu.memory_space<vmem>>, %arg4: memref<1x512xf32, #tpu.memory_space<vmem>>, %arg5: memref<128x512xf32, #tpu.memory_space<vmem>>, %arg6: memref<128x512xf32, #tpu.memory_space<vmem>>, %arg7: memref<1x512xf32, #tpu.memory_space<vmem>>, %arg8: memref<1x128xf32, #tpu.memory_space<vmem>>, %arg9: memref<1x128xf32, #tpu.memory_space<vmem>>, %arg10: memref<1x128xf32, #tpu.memory_space<vmem>>, %arg11: memref<1x128xf32, #tpu.memory_space<vmem>>, %arg12: memref<128x128xf32, #tpu.memory_space<vmem>>, %arg13: memref<128x128xf32, #tpu.memory_space<vmem>>, %arg14: memref<1x128xf32, #tpu.memory_space<vmem>>, %arg15: memref<128x128xf32, #tpu.memory_space<vmem>>, %arg16: memref<1x128xf32, #tpu.memory_space<vmem>>, %arg17: memref<8x1xf32, #tpu.memory_space<vmem>>, %arg18: memref<2x8x128xf32, #tpu.memory_space<vmem>>) attributes {dimension_semantics = [], scalar_prefetch = 0 : i64, scratch_operands = 0 : i64, tpu.core_type = #tpu.core_type<tc>} {
    %c0 = arith.constant 0 : index
    %c0_0 = arith.constant 0 : index
    %0 = vector.load %arg0[%c0, %c0_0] : memref<6x128xf32, #tpu.memory_space<vmem>>, vector<6x128xf32>
    %c0_1 = arith.constant 0 : index
    %c0_2 = arith.constant 0 : index
    %1 = vector.load %arg2[%c0_1, %c0_2] : memref<128x512xf32, #tpu.memory_space<vmem>>, vector<128x512xf32>
    %cst = arith.constant dense<0.000000e+00> : vector<6x512xf32>
    %2 = tpu.matmul %0, %1, %cst {dimension_numbers = #tpu.dot_dimension_numbers<[1], [0], [0], [1], [0, 0, 1, 1], [], []>} : vector<6x128xf32>, vector<128x512xf32>, vector<6x512xf32> -> vector<6x512xf32>
    %c0_3 = arith.constant 0 : index
    %c0_4 = arith.constant 0 : index
    %3 = vector.load %arg4[%c0_3, %c0_4] : memref<1x512xf32, #tpu.memory_space<vmem>>, vector<1x512xf32>
    %4 = vector.broadcast %3 : vector<1x512xf32> to vector<6x512xf32>
    %5 = arith.addf %2, %4 : vector<6x512xf32>
    %c0_5 = arith.constant 0 : index
    %c0_6 = arith.constant 0 : index
    %6 = vector.load %arg1[%c0_5, %c0_6] : memref<6x128xf32, #tpu.memory_space<vmem>>, vector<6x128xf32>
    %c0_7 = arith.constant 0 : index
    %c0_8 = arith.constant 0 : index
    %7 = vector.load %arg5[%c0_7, %c0_8] : memref<128x512xf32, #tpu.memory_space<vmem>>, vector<128x512xf32>
    %cst_9 = arith.constant dense<0.000000e+00> : vector<6x512xf32>
    %8 = tpu.matmul %6, %7, %cst_9 {dimension_numbers = #tpu.dot_dimension_numbers<[1], [0], [0], [1], [0, 0, 1, 1], [], []>} : vector<6x128xf32>, vector<128x512xf32>, vector<6x512xf32> -> vector<6x512xf32>
    %c0_10 = arith.constant 0 : index
    %c0_11 = arith.constant 0 : index
    %9 = vector.load %arg7[%c0_10, %c0_11] : memref<1x512xf32, #tpu.memory_space<vmem>>, vector<1x512xf32>
    %10 = vector.broadcast %9 : vector<1x512xf32> to vector<6x512xf32>
    %11 = arith.addf %8, %10 : vector<6x512xf32>
    %c0_12 = arith.constant 0 : index
    %c0_13 = arith.constant 0 : index
    %12 = vector.load %arg3[%c0_12, %c0_13] : memref<128x512xf32, #tpu.memory_space<vmem>>, vector<128x512xf32>
    %c0_14 = arith.constant 0 : index
    %c0_15 = arith.constant 0 : index
    %13 = vector.load %arg6[%c0_14, %c0_15] : memref<128x512xf32, #tpu.memory_space<vmem>>, vector<128x512xf32>
    %cst_16 = arith.constant 0.000000e+00 : f32
    %14 = vector.broadcast %cst_16 : f32 to vector<2x128xf32>
    %cst_17 = arith.constant 0.000000e+00 : f32
    %15 = vector.broadcast %cst_17 : f32 to vector<2x128xf32>
    %16 = vector.extract_strided_slice %5 {offsets = [0, 0], sizes = [2, 512], strides = [1, 1]} : vector<6x512xf32> to vector<2x512xf32>
    %17 = vector.extract_strided_slice %16 {offsets = [0, 0], sizes = [2, 128], strides = [1, 1]} : vector<2x512xf32> to vector<2x128xf32>
    %18 = arith.negf %17 : vector<2x128xf32>
    %19 = math.exp %18 : vector<2x128xf32>
    %cst_18 = arith.constant 1.000000e+00 : f32
    %20 = vector.broadcast %cst_18 : f32 to vector<2x128xf32>
    %21 = arith.addf %20, %19 : vector<2x128xf32>
    %22 = arith.divf %20, %21 : vector<2x128xf32>
    %23 = vector.extract_strided_slice %16 {offsets = [0, 128], sizes = [2, 128], strides = [1, 1]} : vector<2x512xf32> to vector<2x128xf32>
    %24 = arith.negf %23 : vector<2x128xf32>
    %25 = math.exp %24 : vector<2x128xf32>
    %cst_19 = arith.constant 1.000000e+00 : f32
    %26 = vector.broadcast %cst_19 : f32 to vector<2x128xf32>
    %27 = arith.addf %26, %25 : vector<2x128xf32>
    %28 = arith.divf %26, %27 : vector<2x128xf32>
    %29 = vector.extract_strided_slice %16 {offsets = [0, 256], sizes = [2, 128], strides = [1, 1]} : vector<2x512xf32> to vector<2x128xf32>
    %30 = math.tanh %29 : vector<2x128xf32>
    %31 = vector.extract_strided_slice %16 {offsets = [0, 384], sizes = [2, 128], strides = [1, 1]} : vector<2x512xf32> to vector<2x128xf32>
    %32 = arith.negf %31 : vector<2x128xf32>
    %33 = math.exp %32 : vector<2x128xf32>
    %cst_20 = arith.constant 1.000000e+00 : f32
    %34 = vector.broadcast %cst_20 : f32 to vector<2x128xf32>
    %35 = arith.addf %34, %33 : vector<2x128xf32>
    %36 = arith.divf %34, %35 : vector<2x128xf32>
    %37 = arith.mulf %28, %14 : vector<2x128xf32>
    %38 = arith.mulf %22, %30 : vector<2x128xf32>
    %39 = arith.addf %37, %38 : vector<2x128xf32>
    %40 = math.tanh %39 : vector<2x128xf32>
    %41 = arith.mulf %36, %40 : vector<2x128xf32>
    %42 = vector.extract_strided_slice %11 {offsets = [0, 0], sizes = [2, 512], strides = [1, 1]} : vector<6x512xf32> to vector<2x512xf32>
    %43 = vector.extract_strided_slice %42 {offsets = [0, 0], sizes = [2, 128], strides = [1, 1]} : vector<2x512xf32> to vector<2x128xf32>
    %44 = arith.negf %43 : vector<2x128xf32>
    %45 = math.exp %44 : vector<2x128xf32>
    %cst_21 = arith.constant 1.000000e+00 : f32
    %46 = vector.broadcast %cst_21 : f32 to vector<2x128xf32>
    %47 = arith.addf %46, %45 : vector<2x128xf32>
    %48 = arith.divf %46, %47 : vector<2x128xf32>
    %49 = vector.extract_strided_slice %42 {offsets = [0, 128], sizes = [2, 128], strides = [1, 1]} : vector<2x512xf32> to vector<2x128xf32>
    %50 = arith.negf %49 : vector<2x128xf32>
    %51 = math.exp %50 : vector<2x128xf32>
    %cst_22 = arith.constant 1.000000e+00 : f32
    %52 = vector.broadcast %cst_22 : f32 to vector<2x128xf32>
    %53 = arith.addf %52, %51 : vector<2x128xf32>
    %54 = arith.divf %52, %53 : vector<2x128xf32>
    %55 = vector.extract_strided_slice %42 {offsets = [0, 256], sizes = [2, 128], strides = [1, 1]} : vector<2x512xf32> to vector<2x128xf32>
    %56 = math.tanh %55 : vector<2x128xf32>
    %57 = vector.extract_strided_slice %42 {offsets = [0, 384], sizes = [2, 128], strides = [1, 1]} : vector<2x512xf32> to vector<2x128xf32>
    %58 = arith.negf %57 : vector<2x128xf32>
    %59 = math.exp %58 : vector<2x128xf32>
    %cst_23 = arith.constant 1.000000e+00 : f32
    %60 = vector.broadcast %cst_23 : f32 to vector<2x128xf32>
    %61 = arith.addf %60, %59 : vector<2x128xf32>
    %62 = arith.divf %60, %61 : vector<2x128xf32>
    %63 = arith.mulf %54, %15 : vector<2x128xf32>
    %64 = arith.mulf %48, %56 : vector<2x128xf32>
    %65 = arith.addf %63, %64 : vector<2x128xf32>
    %66 = math.tanh %65 : vector<2x128xf32>
    %67 = arith.mulf %62, %66 : vector<2x128xf32>
    %68 = vector.extract_strided_slice %5 {offsets = [2, 0], sizes = [2, 512], strides = [1, 1]} : vector<6x512xf32> to vector<2x512xf32>
    %cst_24 = arith.constant dense<0.000000e+00> : vector<2x512xf32>
    %69 = tpu.matmul %41, %12, %cst_24 {dimension_numbers = #tpu.dot_dimension_numbers<[1], [0], [0], [1], [0, 0, 1, 1], [], []>} : vector<2x128xf32>, vector<128x512xf32>, vector<2x512xf32> -> vector<2x512xf32>
    %70 = arith.addf %68, %69 : vector<2x512xf32>
    %71 = vector.extract_strided_slice %70 {offsets = [0, 0], sizes = [2, 128], strides = [1, 1]} : vector<2x512xf32> to vector<2x128xf32>
    %72 = arith.negf %71 : vector<2x128xf32>
    %73 = math.exp %72 : vector<2x128xf32>
    %cst_25 = arith.constant 1.000000e+00 : f32
    %74 = vector.broadcast %cst_25 : f32 to vector<2x128xf32>
    %75 = arith.addf %74, %73 : vector<2x128xf32>
    %76 = arith.divf %74, %75 : vector<2x128xf32>
    %77 = vector.extract_strided_slice %70 {offsets = [0, 128], sizes = [2, 128], strides = [1, 1]} : vector<2x512xf32> to vector<2x128xf32>
    %78 = arith.negf %77 : vector<2x128xf32>
    %79 = math.exp %78 : vector<2x128xf32>
    %cst_26 = arith.constant 1.000000e+00 : f32
    %80 = vector.broadcast %cst_26 : f32 to vector<2x128xf32>
    %81 = arith.addf %80, %79 : vector<2x128xf32>
    %82 = arith.divf %80, %81 : vector<2x128xf32>
    %83 = vector.extract_strided_slice %70 {offsets = [0, 256], sizes = [2, 128], strides = [1, 1]} : vector<2x512xf32> to vector<2x128xf32>
    %84 = math.tanh %83 : vector<2x128xf32>
    %85 = vector.extract_strided_slice %70 {offsets = [0, 384], sizes = [2, 128], strides = [1, 1]} : vector<2x512xf32> to vector<2x128xf32>
    %86 = arith.negf %85 : vector<2x128xf32>
    %87 = math.exp %86 : vector<2x128xf32>
    %cst_27 = arith.constant 1.000000e+00 : f32
    %88 = vector.broadcast %cst_27 : f32 to vector<2x128xf32>
    %89 = arith.addf %88, %87 : vector<2x128xf32>
    %90 = arith.divf %88, %89 : vector<2x128xf32>
    %91 = arith.mulf %82, %39 : vector<2x128xf32>
    %92 = arith.mulf %76, %84 : vector<2x128xf32>
    %93 = arith.addf %91, %92 : vector<2x128xf32>
    %94 = math.tanh %93 : vector<2x128xf32>
    %95 = arith.mulf %90, %94 : vector<2x128xf32>
    %96 = vector.extract_strided_slice %11 {offsets = [2, 0], sizes = [2, 512], strides = [1, 1]} : vector<6x512xf32> to vector<2x512xf32>
    %cst_28 = arith.constant dense<0.000000e+00> : vector<2x512xf32>
    %97 = tpu.matmul %67, %13, %cst_28 {dimension_numbers = #tpu.dot_dimension_numbers<[1], [0], [0], [1], [0, 0, 1, 1], [], []>} : vector<2x128xf32>, vector<128x512xf32>, vector<2x512xf32> -> vector<2x512xf32>
    %98 = arith.addf %96, %97 : vector<2x512xf32>
    %99 = vector.extract_strided_slice %98 {offsets = [0, 0], sizes = [2, 128], strides = [1, 1]} : vector<2x512xf32> to vector<2x128xf32>
    %100 = arith.negf %99 : vector<2x128xf32>
    %101 = math.exp %100 : vector<2x128xf32>
    %cst_29 = arith.constant 1.000000e+00 : f32
    %102 = vector.broadcast %cst_29 : f32 to vector<2x128xf32>
    %103 = arith.addf %102, %101 : vector<2x128xf32>
    %104 = arith.divf %102, %103 : vector<2x128xf32>
    %105 = vector.extract_strided_slice %98 {offsets = [0, 128], sizes = [2, 128], strides = [1, 1]} : vector<2x512xf32> to vector<2x128xf32>
    %106 = arith.negf %105 : vector<2x128xf32>
    %107 = math.exp %106 : vector<2x128xf32>
    %cst_30 = arith.constant 1.000000e+00 : f32
    %108 = vector.broadcast %cst_30 : f32 to vector<2x128xf32>
    %109 = arith.addf %108, %107 : vector<2x128xf32>
    %110 = arith.divf %108, %109 : vector<2x128xf32>
    %111 = vector.extract_strided_slice %98 {offsets = [0, 256], sizes = [2, 128], strides = [1, 1]} : vector<2x512xf32> to vector<2x128xf32>
    %112 = math.tanh %111 : vector<2x128xf32>
    %113 = vector.extract_strided_slice %98 {offsets = [0, 384], sizes = [2, 128], strides = [1, 1]} : vector<2x512xf32> to vector<2x128xf32>
    %114 = arith.negf %113 : vector<2x128xf32>
    %115 = math.exp %114 : vector<2x128xf32>
    %cst_31 = arith.constant 1.000000e+00 : f32
    %116 = vector.broadcast %cst_31 : f32 to vector<2x128xf32>
    %117 = arith.addf %116, %115 : vector<2x128xf32>
    %118 = arith.divf %116, %117 : vector<2x128xf32>
    %119 = arith.mulf %110, %65 : vector<2x128xf32>
    %120 = arith.mulf %104, %112 : vector<2x128xf32>
    %121 = arith.addf %119, %120 : vector<2x128xf32>
    %122 = math.tanh %121 : vector<2x128xf32>
    %123 = arith.mulf %118, %122 : vector<2x128xf32>
    %124 = vector.extract_strided_slice %5 {offsets = [4, 0], sizes = [2, 512], strides = [1, 1]} : vector<6x512xf32> to vector<2x512xf32>
    %cst_32 = arith.constant dense<0.000000e+00> : vector<2x512xf32>
    %125 = tpu.matmul %95, %12, %cst_32 {dimension_numbers = #tpu.dot_dimension_numbers<[1], [0], [0], [1], [0, 0, 1, 1], [], []>} : vector<2x128xf32>, vector<128x512xf32>, vector<2x512xf32> -> vector<2x512xf32>
    %126 = arith.addf %124, %125 : vector<2x512xf32>
    %127 = vector.extract_strided_slice %126 {offsets = [0, 0], sizes = [2, 128], strides = [1, 1]} : vector<2x512xf32> to vector<2x128xf32>
    %128 = arith.negf %127 : vector<2x128xf32>
    %129 = math.exp %128 : vector<2x128xf32>
    %cst_33 = arith.constant 1.000000e+00 : f32
    %130 = vector.broadcast %cst_33 : f32 to vector<2x128xf32>
    %131 = arith.addf %130, %129 : vector<2x128xf32>
    %132 = arith.divf %130, %131 : vector<2x128xf32>
    %133 = vector.extract_strided_slice %126 {offsets = [0, 128], sizes = [2, 128], strides = [1, 1]} : vector<2x512xf32> to vector<2x128xf32>
    %134 = arith.negf %133 : vector<2x128xf32>
    %135 = math.exp %134 : vector<2x128xf32>
    %cst_34 = arith.constant 1.000000e+00 : f32
    %136 = vector.broadcast %cst_34 : f32 to vector<2x128xf32>
    %137 = arith.addf %136, %135 : vector<2x128xf32>
    %138 = arith.divf %136, %137 : vector<2x128xf32>
    %139 = vector.extract_strided_slice %126 {offsets = [0, 256], sizes = [2, 128], strides = [1, 1]} : vector<2x512xf32> to vector<2x128xf32>
    %140 = math.tanh %139 : vector<2x128xf32>
    %141 = vector.extract_strided_slice %126 {offsets = [0, 384], sizes = [2, 128], strides = [1, 1]} : vector<2x512xf32> to vector<2x128xf32>
    %142 = arith.negf %141 : vector<2x128xf32>
    %143 = math.exp %142 : vector<2x128xf32>
    %cst_35 = arith.constant 1.000000e+00 : f32
    %144 = vector.broadcast %cst_35 : f32 to vector<2x128xf32>
    %145 = arith.addf %144, %143 : vector<2x128xf32>
    %146 = arith.divf %144, %145 : vector<2x128xf32>
    %147 = arith.mulf %138, %93 : vector<2x128xf32>
    %148 = arith.mulf %132, %140 : vector<2x128xf32>
    %149 = arith.addf %147, %148 : vector<2x128xf32>
    %150 = math.tanh %149 : vector<2x128xf32>
    %151 = arith.mulf %146, %150 : vector<2x128xf32>
    %152 = vector.extract_strided_slice %11 {offsets = [4, 0], sizes = [2, 512], strides = [1, 1]} : vector<6x512xf32> to vector<2x512xf32>
    %cst_36 = arith.constant dense<0.000000e+00> : vector<2x512xf32>
    %153 = tpu.matmul %123, %13, %cst_36 {dimension_numbers = #tpu.dot_dimension_numbers<[1], [0], [0], [1], [0, 0, 1, 1], [], []>} : vector<2x128xf32>, vector<128x512xf32>, vector<2x512xf32> -> vector<2x512xf32>
    %154 = arith.addf %152, %153 : vector<2x512xf32>
    %155 = vector.extract_strided_slice %154 {offsets = [0, 0], sizes = [2, 128], strides = [1, 1]} : vector<2x512xf32> to vector<2x128xf32>
    %156 = arith.negf %155 : vector<2x128xf32>
    %157 = math.exp %156 : vector<2x128xf32>
    %cst_37 = arith.constant 1.000000e+00 : f32
    %158 = vector.broadcast %cst_37 : f32 to vector<2x128xf32>
    %159 = arith.addf %158, %157 : vector<2x128xf32>
    %160 = arith.divf %158, %159 : vector<2x128xf32>
    %161 = vector.extract_strided_slice %154 {offsets = [0, 128], sizes = [2, 128], strides = [1, 1]} : vector<2x512xf32> to vector<2x128xf32>
    %162 = arith.negf %161 : vector<2x128xf32>
    %163 = math.exp %162 : vector<2x128xf32>
    %cst_38 = arith.constant 1.000000e+00 : f32
    %164 = vector.broadcast %cst_38 : f32 to vector<2x128xf32>
    %165 = arith.addf %164, %163 : vector<2x128xf32>
    %166 = arith.divf %164, %165 : vector<2x128xf32>
    %167 = vector.extract_strided_slice %154 {offsets = [0, 256], sizes = [2, 128], strides = [1, 1]} : vector<2x512xf32> to vector<2x128xf32>
    %168 = math.tanh %167 : vector<2x128xf32>
    %169 = vector.extract_strided_slice %154 {offsets = [0, 384], sizes = [2, 128], strides = [1, 1]} : vector<2x512xf32> to vector<2x128xf32>
    %170 = arith.negf %169 : vector<2x128xf32>
    %171 = math.exp %170 : vector<2x128xf32>
    %cst_39 = arith.constant 1.000000e+00 : f32
    %172 = vector.broadcast %cst_39 : f32 to vector<2x128xf32>
    %173 = arith.addf %172, %171 : vector<2x128xf32>
    %174 = arith.divf %172, %173 : vector<2x128xf32>
    %175 = arith.mulf %166, %121 : vector<2x128xf32>
    %176 = arith.mulf %160, %168 : vector<2x128xf32>
    %177 = arith.addf %175, %176 : vector<2x128xf32>
    %178 = math.tanh %177 : vector<2x128xf32>
    %179 = arith.mulf %174, %178 : vector<2x128xf32>
    %cst_40 = arith.constant dense<0.000000e+00> : vector<2xf32>
    %180 = vector.multi_reduction <add>, %151, %cst_40 [1] : vector<2x128xf32> to vector<2xf32>
    %181 = vector.shape_cast %180 : vector<2xf32> to vector<2x1xf32>
    %cst_41 = arith.constant dense<0.000000e+00> : vector<2xf32>
    %182 = vector.multi_reduction <add>, %179, %cst_41 [1] : vector<2x128xf32> to vector<2xf32>
    %183 = vector.shape_cast %182 : vector<2xf32> to vector<2x1xf32>
    %184 = arith.addf %181, %183 : vector<2x1xf32>
    %cst_42 = arith.constant 3.906250e-03 : f32
    %185 = vector.broadcast %cst_42 : f32 to vector<2x1xf32>
    %186 = arith.mulf %184, %185 : vector<2x1xf32>
    %187 = vector.broadcast %186 : vector<2x1xf32> to vector<2x128xf32>
    %188 = arith.subf %151, %187 : vector<2x128xf32>
    %189 = vector.broadcast %186 : vector<2x1xf32> to vector<2x128xf32>
    %190 = arith.subf %179, %189 : vector<2x128xf32>
    %191 = arith.mulf %188, %188 : vector<2x128xf32>
    %cst_43 = arith.constant dense<0.000000e+00> : vector<2xf32>
    %192 = vector.multi_reduction <add>, %191, %cst_43 [1] : vector<2x128xf32> to vector<2xf32>
    %193 = vector.shape_cast %192 : vector<2xf32> to vector<2x1xf32>
    %194 = arith.mulf %190, %190 : vector<2x128xf32>
    %cst_44 = arith.constant dense<0.000000e+00> : vector<2xf32>
    %195 = vector.multi_reduction <add>, %194, %cst_44 [1] : vector<2x128xf32> to vector<2xf32>
    %196 = vector.shape_cast %195 : vector<2xf32> to vector<2x1xf32>
    %197 = arith.addf %193, %196 : vector<2x1xf32>
    %cst_45 = arith.constant 3.906250e-03 : f32
    %198 = vector.broadcast %cst_45 : f32 to vector<2x1xf32>
    %199 = arith.mulf %197, %198 : vector<2x1xf32>
    %cst_46 = arith.constant 9.99999974E-6 : f32
    %200 = vector.broadcast %cst_46 : f32 to vector<2x1xf32>
    %201 = arith.addf %199, %200 : vector<2x1xf32>
    %202 = math.rsqrt %201 : vector<2x1xf32>
    %203 = vector.broadcast %202 : vector<2x1xf32> to vector<2x128xf32>
    %204 = arith.mulf %188, %203 : vector<2x128xf32>
    %c0_47 = arith.constant 0 : index
    %c0_48 = arith.constant 0 : index
    %205 = vector.load %arg8[%c0_47, %c0_48] : memref<1x128xf32, #tpu.memory_space<vmem>>, vector<1x128xf32>
    %206 = vector.broadcast %205 : vector<1x128xf32> to vector<2x128xf32>
    %207 = arith.mulf %204, %206 : vector<2x128xf32>
    %c0_49 = arith.constant 0 : index
    %c0_50 = arith.constant 0 : index
    %208 = vector.load %arg9[%c0_49, %c0_50] : memref<1x128xf32, #tpu.memory_space<vmem>>, vector<1x128xf32>
    %209 = vector.broadcast %208 : vector<1x128xf32> to vector<2x128xf32>
    %210 = arith.addf %207, %209 : vector<2x128xf32>
    %211 = vector.broadcast %202 : vector<2x1xf32> to vector<2x128xf32>
    %212 = arith.mulf %190, %211 : vector<2x128xf32>
    %c0_51 = arith.constant 0 : index
    %c0_52 = arith.constant 0 : index
    %213 = vector.load %arg10[%c0_51, %c0_52] : memref<1x128xf32, #tpu.memory_space<vmem>>, vector<1x128xf32>
    %214 = vector.broadcast %213 : vector<1x128xf32> to vector<2x128xf32>
    %215 = arith.mulf %212, %214 : vector<2x128xf32>
    %c0_53 = arith.constant 0 : index
    %c0_54 = arith.constant 0 : index
    %216 = vector.load %arg11[%c0_53, %c0_54] : memref<1x128xf32, #tpu.memory_space<vmem>>, vector<1x128xf32>
    %217 = vector.broadcast %216 : vector<1x128xf32> to vector<2x128xf32>
    %218 = arith.addf %215, %217 : vector<2x128xf32>
    %c0_55 = arith.constant 0 : index
    %c0_56 = arith.constant 0 : index
    %219 = vector.load %arg12[%c0_55, %c0_56] : memref<128x128xf32, #tpu.memory_space<vmem>>, vector<128x128xf32>
    %cst_57 = arith.constant dense<0.000000e+00> : vector<2x128xf32>
    %220 = tpu.matmul %210, %219, %cst_57 {dimension_numbers = #tpu.dot_dimension_numbers<[1], [0], [0], [1], [0, 0, 1, 1], [], []>} : vector<2x128xf32>, vector<128x128xf32>, vector<2x128xf32> -> vector<2x128xf32>
    %c0_58 = arith.constant 0 : index
    %c0_59 = arith.constant 0 : index
    %221 = vector.load %arg13[%c0_58, %c0_59] : memref<128x128xf32, #tpu.memory_space<vmem>>, vector<128x128xf32>
    %cst_60 = arith.constant dense<0.000000e+00> : vector<2x128xf32>
    %222 = tpu.matmul %218, %221, %cst_60 {dimension_numbers = #tpu.dot_dimension_numbers<[1], [0], [0], [1], [0, 0, 1, 1], [], []>} : vector<2x128xf32>, vector<128x128xf32>, vector<2x128xf32> -> vector<2x128xf32>
    %223 = arith.addf %220, %222 : vector<2x128xf32>
    %c0_61 = arith.constant 0 : index
    %c0_62 = arith.constant 0 : index
    %224 = vector.load %arg14[%c0_61, %c0_62] : memref<1x128xf32, #tpu.memory_space<vmem>>, vector<1x128xf32>
    %225 = vector.broadcast %224 : vector<1x128xf32> to vector<2x128xf32>
    %226 = arith.addf %223, %225 : vector<2x128xf32>
    %cst_63 = arith.constant 5.000000e-01 : f32
    %227 = vector.broadcast %cst_63 : f32 to vector<2x128xf32>
    %228 = arith.mulf %227, %226 : vector<2x128xf32>
    %cst_64 = arith.constant 0.707106769 : f32
    %229 = vector.broadcast %cst_64 : f32 to vector<2x128xf32>
    %230 = arith.mulf %226, %229 : vector<2x128xf32>
    %231 = math.erf %230 : vector<2x128xf32>
    %cst_65 = arith.constant 1.000000e+00 : f32
    %232 = vector.broadcast %cst_65 : f32 to vector<2x128xf32>
    %233 = arith.addf %232, %231 : vector<2x128xf32>
    %234 = arith.mulf %228, %233 : vector<2x128xf32>
    %c0_66 = arith.constant 0 : index
    %c0_67 = arith.constant 0 : index
    %235 = vector.load %arg15[%c0_66, %c0_67] : memref<128x128xf32, #tpu.memory_space<vmem>>, vector<128x128xf32>
    %cst_68 = arith.constant dense<0.000000e+00> : vector<2x128xf32>
    %236 = tpu.matmul %234, %235, %cst_68 {dimension_numbers = #tpu.dot_dimension_numbers<[1], [0], [0], [1], [0, 0, 1, 1], [], []>} : vector<2x128xf32>, vector<128x128xf32>, vector<2x128xf32> -> vector<2x128xf32>
    %c0_69 = arith.constant 0 : index
    %c0_70 = arith.constant 0 : index
    %237 = vector.load %arg16[%c0_69, %c0_70] : memref<1x128xf32, #tpu.memory_space<vmem>>, vector<1x128xf32>
    %238 = vector.broadcast %237 : vector<1x128xf32> to vector<2x128xf32>
    %239 = arith.addf %236, %238 : vector<2x128xf32>
    %240 = vector.shape_cast %239 : vector<2x128xf32> to vector<2x1x128xf32>
    %c0_71 = arith.constant 0 : index
    %c0_72 = arith.constant 0 : index
    %241 = vector.load %arg17[%c0_71, %c0_72] : memref<8x1xf32, #tpu.memory_space<vmem>>, vector<8x1xf32>
    %242 = vector.shape_cast %241 : vector<8x1xf32> to vector<1x8x1xf32>
    %243 = vector.broadcast %240 : vector<2x1x128xf32> to vector<2x8x128xf32>
    %244 = vector.broadcast %242 : vector<1x8x1xf32> to vector<2x8x128xf32>
    %245 = arith.mulf %243, %244 : vector<2x8x128xf32>
    %c0_73 = arith.constant 0 : index
    %c0_74 = arith.constant 0 : index
    %c0_75 = arith.constant 0 : index
    %246 = vector.load %arg18[%c0_73, %c0_74, %c0_75] : memref<2x8x128xf32, #tpu.memory_space<vmem>>, vector<2x8x128xf32>
    tpu.vector_store %arg18[%c0_73, %c0_74, %c0_75], %245 {strides = array<i32>} : memref<2x8x128xf32, #tpu.memory_space<vmem>>, vector<2x8x128xf32>,
    return
  }
}

</mosaic_0001>

<llo_original>
// kernel: tpu_custom_call.1
$region0: #{tpu_custom_call.1}
  #allocation0 [shape = 'u32[]', space=smem, size = 0x4, offset = 0x4, fixed_abs, tag = 'smem constant byte address 0x4 - core index']
  #allocation1 [shape = 'u32[144,128]{1,0:T(1,128)}', space=vmem, size = 0x12000, scoped, tag = 'internal scratch']
  %s0 = inlined_call_operand.vmem [shape: f32[6,128], index: 0, kind: input, shape index: {}]
  %s1 = inlined_call_operand.hbm [shape: f32[6,128], index: 1, kind: input, shape index: {}]
  %s2 = inlined_call_operand.hbm [shape: f32[128,512], index: 2, kind: input, shape index: {}]
  %s3 = inlined_call_operand.hbm [shape: f32[128,512], index: 3, kind: input, shape index: {}]
  %s4 = inlined_call_operand.vmem [shape: f32[1,512], index: 4, kind: input, shape index: {}]
  %s5 = inlined_call_operand.hbm [shape: f32[128,512], index: 5, kind: input, shape index: {}]
  %s6 = inlined_call_operand.hbm [shape: f32[128,512], index: 6, kind: input, shape index: {}]
  %s7 = inlined_call_operand.vmem [shape: f32[1,512], index: 7, kind: input, shape index: {}]
  %s8 = inlined_call_operand.vmem [shape: f32[1,128], index: 8, kind: input, shape index: {}]
  %s9 = inlined_call_operand.vmem [shape: f32[1,128], index: 9, kind: input, shape index: {}]
  %s10 = inlined_call_operand.vmem [shape: f32[1,128], index: 10, kind: input, shape index: {}]
  %s11 = inlined_call_operand.vmem [shape: f32[1,128], index: 11, kind: input, shape index: {}]
  %s12 = inlined_call_operand.hbm [shape: f32[128,128], index: 12, kind: input, shape index: {}]
  %s13 = inlined_call_operand.hbm [shape: f32[128,128], index: 13, kind: input, shape index: {}]
  %s14 = inlined_call_operand.vmem [shape: f32[1,128], index: 14, kind: input, shape index: {}]
  %s15 = inlined_call_operand.hbm [shape: f32[128,128], index: 15, kind: input, shape index: {}]
  %s16 = inlined_call_operand.vmem [shape: f32[1,128], index: 16, kind: input, shape index: {}]
  %s17 = inlined_call_operand.vmem [shape: f32[8,1], index: 17, kind: input, shape index: {}]
  %s18 = inlined_call_operand.hbm [shape: f32[2,8,128], index: 18, kind: output, shape index: {}]
  %s19 = sld [smem:[#allocation0]]
  $region114: #{tpu_custom_call.1} parent=0
    _
  %s21 = ssub.s32 1, %s19
  %s22 = scalar_select 0, %s21, %s19
  $region1: #{tpu_custom_call.1} parent=0
    #allocation2 [shape = 'u8[4096]{0}', space=vmem, size = 0x1000, scoped, tag = 'input window, operand 1, single buffered']
    #allocation3 [shape = 's32[1]{0}', space=sflag, size = 0x4, scoped, tag = 'scoped memory for tpu_custom_call.1']
    #allocation4 [shape = 's32[1]{0}', space=sflag, size = 0x4, scoped, tag = 'scoped memory for tpu_custom_call.1']
    #allocation5 [shape = 'u8[262144]{0}', space=vmem, size = 0x40000, scoped, tag = 'input window, operand 2, single buffered']
    #allocation6 [shape = 's32[1]{0}', space=sflag, size = 0x4, scoped, tag = 'scoped memory for tpu_custom_call.1']
    #allocation7 [shape = 'u8[262144]{0}', space=vmem, size = 0x40000, scoped, tag = 'input window, operand 3, single buffered']
    #allocation8 [shape = 'u8[262144]{0}', space=vmem, size = 0x40000, scoped, tag = 'input window, operand 5, single buffered']
    #allocation9 [shape = 's32[1]{0}', space=sflag, size = 0x4, scoped, tag = 'scoped memory for tpu_custom_call.1']
    #allocation10 [shape = 'u8[262144]{0}', space=vmem, size = 0x40000, scoped, tag = 'input window, operand 6, single buffered']
    #allocation11 [shape = 'u8[65536]{0}', space=vmem, size = 0x10000, scoped, tag = 'input window, operand 12, single buffered']
    #allocation12 [shape = 's32[1]{0}', space=sflag, size = 0x4, scoped, tag = 'scoped memory for tpu_custom_call.1']
    #allocation13 [shape = 'u8[65536]{0}', space=vmem, size = 0x10000, scoped, tag = 'input window, operand 13, single buffered']
    #allocation14 [shape = 'u8[65536]{0}', space=vmem, size = 0x10000, scoped, tag = 'input window, operand 15, single buffered']
    #allocation15 [shape = 's32[1]{0}', space=sflag, size = 0x4, scoped, tag = 'scoped memory for tpu_custom_call.1']
    #allocation16 [shape = 'u8[8192]{0}', space=vmem, size = 0x2000, scoped, tag = 'output window, operand 0, single buffered']
    %23 = vsyncpa [#allocation3], 0
    %24 = vsyncpa [#allocation6], 0
    %25 = vsyncpa [#allocation9], 0
    %26 = vsyncpa [#allocation12], 0
    %27 = vsyncpa [#allocation15], 0
    %28 = vsyncpa [#allocation4], 0
    // Predicated region
    $region2: #{tpu_custom_call.1} parent=1 // pred_check
      _
    $region3: #{tpu_custom_call.1} parent=1 // pred_check_branch
      %30 = sbr.rel (0) target = $region5
    $region4: #{tpu_custom_call.1} parent=1 // pred_region
      _
    $region5: #{tpu_custom_call.1} parent=1 // pred_fallthru
      _
    // Predicated region
    $region6: #{tpu_custom_call.1} parent=1 // pred_check
      _
    $region7: #{tpu_custom_call.1} parent=1 // pred_check_branch
      %32 = sbr.rel (0) target = $region9
    $region8: #{tpu_custom_call.1} parent=1 // pred_region
      %s34 = ssub.s32 128, 128
      %35 = vsyncadd [#allocation3], %s34
      %s37 = sshll.u32 [#allocation2], 4
      %s38 = int_to_ptr.vmem [resolvable:$true] %s37
      %40 = dma.hbm_to_vmem [thread:$0]  %s1, 128, %s38, [#allocation3]
    $region9: #{tpu_custom_call.1} parent=1 // pred_fallthru
      _
    // Predicated region
    $region10: #{tpu_custom_call.1} parent=1 // pred_check
      _
    $region11: #{tpu_custom_call.1} parent=1 // pred_check_branch
      %42 = sbr.rel (0) target = $region13
    $region12: #{tpu_custom_call.1} parent=1 // pred_region
      %s44 = ssub.s32 8192, 8192
      %45 = vsyncadd [#allocation6], %s44
      %s46 = sshll.u32 [#allocation5], 4
      %s47 = int_to_ptr.vmem [resolvable:$true] %s46
      %52 = dma.hbm_to_vmem [thread:$0]  %s2, 8192, %s47, [#allocation6], 512, 512, 32
    $region13: #{tpu_custom_call.1} parent=1 // pred_fallthru
      _
    // Predicated region
    $region14: #{tpu_custom_call.1} parent=1 // pred_check
      _
    $region15: #{tpu_custom_call.1} parent=1 // pred_check_branch
      %54 = sbr.rel (0) target = $region17
    $region16: #{tpu_custom_call.1} parent=1 // pred_region
      %s56 = ssub.s32 8192, 8192
      %57 = vsyncadd [#allocation6], %s56
      %s58 = sshll.u32 [#allocation7], 4
      %s59 = int_to_ptr.vmem [resolvable:$true] %s58
      %64 = dma.hbm_to_vmem [thread:$0]  %s3, 8192, %s59, [#allocation6], 512, 512, 32
    $region17: #{tpu_custom_call.1} parent=1 // pred_fallthru
      _
    // Predicated region
    $region18: #{tpu_custom_call.1} parent=1 // pred_check
      _
    $region19: #{tpu_custom_call.1} parent=1 // pred_check_branch
      %66 = sbr.rel (0) target = $region21
    $region20: #{tpu_custom_call.1} parent=1 // pred_region
      _
    $region21: #{tpu_custom_call.1} parent=1 // pred_fallthru
      _
    // Predicated region
    $region22: #{tpu_custom_call.1} parent=1 // pred_check
      _
    $region23: #{tpu_custom_call.1} parent=1 // pred_check_branch
      %68 = sbr.rel (0) target = $region25
    $region24: #{tpu_custom_call.1} parent=1 // pred_region
      %s70 = ssub.s32 8192, 8192
      %71 = vsyncadd [#allocation9], %s70
      %s72 = sshll.u32 [#allocation8], 4
      %s73 = int_to_ptr.vmem [resolvable:$true] %s72
      %78 = dma.hbm_to_vmem [thread:$0]  %s5, 8192, %s73, [#allocation9], 512, 512, 32
    $region25: #{tpu_custom_call.1} parent=1 // pred_fallthru
      _
    // Predicated region
    $region26: #{tpu_custom_call.1} parent=1 // pred_check
      _
    $region27: #{tpu_custom_call.1} parent=1 // pred_check_branch
      %80 = sbr.rel (0) target = $region29
    $region28: #{tpu_custom_call.1} parent=1 // pred_region
      %s82 = ssub.s32 8192, 8192
      %83 = vsyncadd [#allocation9], %s82
      %s84 = sshll.u32 [#allocation10], 4
      %s85 = int_to_ptr.vmem [resolvable:$true] %s84
      %90 = dma.hbm_to_vmem [thread:$0]  %s6, 8192, %s85, [#allocation9], 512, 512, 32
    $region29: #{tpu_custom_call.1} parent=1 // pred_fallthru
      _
    // Predicated region
    $region30: #{tpu_custom_call.1} parent=1 // pred_check
      _
    $region31: #{tpu_custom_call.1} parent=1 // pred_check_branch
      %92 = sbr.rel (0) target = $region33
    $region32: #{tpu_custom_call.1} parent=1 // pred_region
      _
    $region33: #{tpu_custom_call.1} parent=1 // pred_fallthru
      _
    // Predicated region
    $region34: #{tpu_custom_call.1} parent=1 // pred_check
      _
    $region35: #{tpu_custom_call.1} parent=1 // pred_check_branch
      %94 = sbr.rel (0) target = $region37
    $region36: #{tpu_custom_call.1} parent=1 // pred_region
      _
    $region37: #{tpu_custom_call.1} parent=1 // pred_fallthru
      _
    // Predicated region
    $region38: #{tpu_custom_call.1} parent=1 // pred_check
      _
    $region39: #{tpu_custom_call.1} parent=1 // pred_check_branch
      %96 = sbr.rel (0) target = $region41
    $region40: #{tpu_custom_call.1} parent=1 // pred_region
      _
    $region41: #{tpu_custom_call.1} parent=1 // pred_fallthru
      _
    // Predicated region
    $region42: #{tpu_custom_call.1} parent=1 // pred_check
      _
    $region43: #{tpu_custom_call.1} parent=1 // pred_check_branch
      %98 = sbr.rel (0) target = $region45
    $region44: #{tpu_custom_call.1} parent=1 // pred_region
      _
    $region45: #{tpu_custom_call.1} parent=1 // pred_fallthru
      _
    // Predicated region
    $region46: #{tpu_custom_call.1} parent=1 // pred_check
      _
    $region47: #{tpu_custom_call.1} parent=1 // pred_check_branch
      %100 = sbr.rel (0) target = $region49
    $region48: #{tpu_custom_call.1} parent=1 // pred_region
      _
    $region49: #{tpu_custom_call.1} parent=1 // pred_fallthru
      _
    // Predicated region
    $region50: #{tpu_custom_call.1} parent=1 // pred_check
      _
    $region51: #{tpu_custom_call.1} parent=1 // pred_check_branch
      %102 = sbr.rel (0) target = $region53
    $region52: #{tpu_custom_call.1} parent=1 // pred_region
      %s104 = ssub.s32 2048, 2048
      %105 = vsyncadd [#allocation12], %s104
      %s106 = sshll.u32 [#allocation11], 4
      %s107 = int_to_ptr.vmem [resolvable:$true] %s106
      %112 = dma.hbm_to_vmem [thread:$0]  %s12, 2048, %s107, [#allocation12], 128, 128, 8
    $region53: #{tpu_custom_call.1} parent=1 // pred_fallthru
      _
    // Predicated region
    $region54: #{tpu_custom_call.1} parent=1 // pred_check
      _
    $region55: #{tpu_custom_call.1} parent=1 // pred_check_branch
      %114 = sbr.rel (0) target = $region57
    $region56: #{tpu_custom_call.1} parent=1 // pred_region
      %s116 = ssub.s32 2048, 2048
      %117 = vsyncadd [#allocation12], %s116
      %s118 = sshll.u32 [#allocation13], 4
      %s119 = int_to_ptr.vmem [resolvable:$true] %s118
      %124 = dma.hbm_to_vmem [thread:$0]  %s13, 2048, %s119, [#allocation12], 128, 128, 8
    $region57: #{tpu_custom_call.1} parent=1 // pred_fallthru
      _
    // Predicated region
    $region58: #{tpu_custom_call.1} parent=1 // pred_check
      _
    $region59: #{tpu_custom_call.1} parent=1 // pred_check_branch
      %126 = sbr.rel (0) target = $region61
    $region60: #{tpu_custom_call.1} parent=1 // pred_region
      _
    $region61: #{tpu_custom_call.1} parent=1 // pred_fallthru
      _
    // Predicated region
    $region62: #{tpu_custom_call.1} parent=1 // pred_check
      _
    $region63: #{tpu_custom_call.1} parent=1 // pred_check_branch
      %128 = sbr.rel (0) target = $region65
    $region64: #{tpu_custom_call.1} parent=1 // pred_region
      %s130 = ssub.s32 2048, 2048
      %131 = vsyncadd [#allocation15], %s130
      %s132 = sshll.u32 [#allocation14], 4
      %s133 = int_to_ptr.vmem [resolvable:$true] %s132
      %138 = dma.hbm_to_vmem [thread:$0]  %s15, 2048, %s133, [#allocation15], 128, 128, 8
    $region65: #{tpu_custom_call.1} parent=1 // pred_fallthru
      _
    // Predicated region
    $region66: #{tpu_custom_call.1} parent=1 // pred_check
      _
    $region67: #{tpu_custom_call.1} parent=1 // pred_check_branch
      %140 = sbr.rel (0) target = $region69
    $region68: #{tpu_custom_call.1} parent=1 // pred_region
      _
    $region69: #{tpu_custom_call.1} parent=1 // pred_fallthru
      _
    // Predicated region
    $region70: #{tpu_custom_call.1} parent=1 // pred_check
      _
    $region71: #{tpu_custom_call.1} parent=1 // pred_check_branch
      %142 = sbr.rel (0) target = $region73
    $region72: #{tpu_custom_call.1} parent=1 // pred_region
      _
    $region73: #{tpu_custom_call.1} parent=1 // pred_fallthru
      _
    // Predicated region
    $region74: #{tpu_custom_call.1} parent=1 // pred_check
      _
    $region75: #{tpu_custom_call.1} parent=1 // pred_check_branch
      %144 = sbr.rel (0) target = $region77
    $region76: #{tpu_custom_call.1} parent=1 // pred_region
      %145 = dma.done [#allocation3], 128
    $region77: #{tpu_custom_call.1} parent=1 // pred_fallthru
      _
    // Predicated region
    $region78: #{tpu_custom_call.1} parent=1 // pred_check
      _
    $region79: #{tpu_custom_call.1} parent=1 // pred_check_branch
      %147 = sbr.rel (0) target = $region81
    $region80: #{tpu_custom_call.1} parent=1 // pred_region
      %148 = dma.done [#allocation6], 8192
    $region81: #{tpu_custom_call.1} parent=1 // pred_fallthru
      _
    // Predicated region
    $region82: #{tpu_custom_call.1} parent=1 // pred_check
      _
    $region83: #{tpu_custom_call.1} parent=1 // pred_check_branch
      %150 = sbr.rel (0) target = $region85
    $region84: #{tpu_custom_call.1} parent=1 // pred_region
      %151 = dma.done [#allocation6], 8192
    $region85: #{tpu_custom_call.1} parent=1 // pred_fallthru
      _
    // Predicated region
    $region86: #{tpu_custom_call.1} parent=1 // pred_check
      _
    $region87: #{tpu_custom_call.1} parent=1 // pred_check_branch
      %153 = sbr.rel (0) target = $region89
    $region88: #{tpu_custom_call.1} parent=1 // pred_region
      %154 = dma.done [#allocation9], 8192
    $region89: #{tpu_custom_call.1} parent=1 // pred_fallthru
      _
    // Predicated region
    $region90: #{tpu_custom_call.1} parent=1 // pred_check
      _
    $region91: #{tpu_custom_call.1} parent=1 // pred_check_branch
      %156 = sbr.rel (0) target = $region93
    $region92: #{tpu_custom_call.1} parent=1 // pred_region
      %157 = dma.done [#allocation9], 8192
    $region93: #{tpu_custom_call.1} parent=1 // pred_fallthru
      _
    // Predicated region
    $region94: #{tpu_custom_call.1} parent=1 // pred_check
      _
    $region95: #{tpu_custom_call.1} parent=1 // pred_check_branch
      %159 = sbr.rel (0) target = $region97
    $region96: #{tpu_custom_call.1} parent=1 // pred_region
      %160 = dma.done [#allocation12], 2048
    $region97: #{tpu_custom_call.1} parent=1 // pred_fallthru
      _
    // Predicated region
    $region98: #{tpu_custom_call.1} parent=1 // pred_check
      _
    $region99: #{tpu_custom_call.1} parent=1 // pred_check_branch
      %162 = sbr.rel (0) target = $region101
    $region100: #{tpu_custom_call.1} parent=1 // pred_region
      %163 = dma.done [#allocation12], 2048
    $region101: #{tpu_custom_call.1} parent=1 // pred_fallthru
      _
    // Predicated region
    $region102: #{tpu_custom_call.1} parent=1 // pred_check
      _
    $region103: #{tpu_custom_call.1} parent=1 // pred_check_branch
      %165 = sbr.rel (0) target = $region105
    $region104: #{tpu_custom_call.1} parent=1 // pred_region
      %166 = dma.done [#allocation15], 2048
    $region105: #{tpu_custom_call.1} parent=1 // pred_fallthru
      _
    %v167 = vld [vmem:[%s0] sm:$0x3f]
    %v168 = vld [vmem:[#allocation5] sm:$0xff]
    %v169 = vld [vmem:[#allocation5 + $0x8] sm:$0xff]
    %v170 = vld [vmem:[#allocation5 + $0x10] sm:$0xff]
    %v171 = vld [vmem:[#allocation5 + $0x18] sm:$0xff]
    %v172 = vld [vmem:[#allocation5 + $0x20] sm:$0xff]
    %v173 = vld [vmem:[#allocation5 + $0x28] sm:$0xff]
    %v174 = vld [vmem:[#allocation5 + $0x30] sm:$0xff]
    %v175 = vld [vmem:[#allocation5 + $0x38] sm:$0xff]
    %v176 = vld [vmem:[#allocation5 + $0x40] sm:$0xff]
    %v177 = vld [vmem:[#allocation5 + $0x48] sm:$0xff]
    %v178 = vld [vmem:[#allocation5 + $0x50] sm:$0xff]
    %v179 = vld [vmem:[#allocation5 + $0x58] sm:$0xff]
    %v180 = vld [vmem:[#allocation5 + $0x60] sm:$0xff]
    %v181 = vld [vmem:[#allocation5 + $0x68] sm:$0xff]
    %v182 = vld [vmem:[#allocation5 + $0x70] sm:$0xff]
    %v183 = vld [vmem:[#allocation5 + $0x78] sm:$0xff]
    %v184 = vld [vmem:[#allocation5 + $0x80] sm:$0xff]
    %v185 = vld [vmem:[#allocation5 + $0x88] sm:$0xff]
    %v186 = vld [vmem:[#allocation5 + $0x90] sm:$0xff]
    %v187 = vld [vmem:[#allocation5 + $0x98] sm:$0xff]
    %v188 = vld [vmem:[#allocation5 + $0xa0] sm:$0xff]
    %v189 = vld [vmem:[#allocation5 + $0xa8] sm:$0xff]
    %v190 = vld [vmem:[#allocation5 + $0xb0] sm:$0xff]
    %v191 = vld [vmem:[#allocation5 + $0xb8] sm:$0xff]
    %v192 = vld [vmem:[#allocation5 + $0xc0] sm:$0xff]
    %v193 = vld [vmem:[#allocation5 + $0xc8] sm:$0xff]
    %v194 = vld [vmem:[#allocation5 + $0xd0] sm:$0xff]
    %v195 = vld [vmem:[#allocation5 + $0xd8] sm:$0xff]
    %v196 = vld [vmem:[#allocation5 + $0xe0] sm:$0xff]
    %v197 = vld [vmem:[#allocation5 + $0xe8] sm:$0xff]
    %v198 = vld [vmem:[#allocation5 + $0xf0] sm:$0xff]
    %v199 = vld [vmem:[#allocation5 + $0xf8] sm:$0xff]
    %v200 = vld [vmem:[#allocation5 + $0x100] sm:$0xff]
    %v201 = vld [vmem:[#allocation5 + $0x108] sm:$0xff]
    %v202 = vld [vmem:[#allocation5 + $0x110] sm:$0xff]
    %v203 = vld [vmem:[#allocation5 + $0x118] sm:$0xff]
    %v204 = vld [vmem:[#allocation5 + $0x120] sm:$0xff]
    %v205 = vld [vmem:[#allocation5 + $0x128] sm:$0xff]
    %v206 = vld [vmem:[#allocation5 + $0x130] sm:$0xff]
    %v207 = vld [vmem:[#allocation5 + $0x138] sm:$0xff]
    %v208 = vld [vmem:[#allocation5 + $0x140] sm:$0xff]
    %v209 = vld [vmem:[#allocation5 + $0x148] sm:$0xff]
    %v210 = vld [vmem:[#allocation5 + $0x150] sm:$0xff]
    %v211 = vld [vmem:[#allocation5 + $0x158] sm:$0xff]
    %v212 = vld [vmem:[#allocation5 + $0x160] sm:$0xff]
    %v213 = vld [vmem:[#allocation5 + $0x168] sm:$0xff]
    %v214 = vld [vmem:[#allocation5 + $0x170] sm:$0xff]
    %v215 = vld [vmem:[#allocation5 + $0x178] sm:$0xff]
    %v216 = vld [vmem:[#allocation5 + $0x180] sm:$0xff]
    %v217 = vld [vmem:[#allocation5 + $0x188] sm:$0xff]
    %v218 = vld [vmem:[#allocation5 + $0x190] sm:$0xff]
    %v219 = vld [vmem:[#allocation5 + $0x198] sm:$0xff]
    %v220 = vld [vmem:[#allocation5 + $0x1a0] sm:$0xff]
    %v221 = vld [vmem:[#allocation5 + $0x1a8] sm:$0xff]
    %v222 = vld [vmem:[#allocation5 + $0x1b0] sm:$0xff]
    %v223 = vld [vmem:[#allocation5 + $0x1b8] sm:$0xff]
    %v224 = vld [vmem:[#allocation5 + $0x1c0] sm:$0xff]
    %v225 = vld [vmem:[#allocation5 + $0x1c8] sm:$0xff]
    %v226 = vld [vmem:[#allocation5 + $0x1d0] sm:$0xff]
    %v227 = vld [vmem:[#allocation5 + $0x1d8] sm:$0xff]
    %v228 = vld [vmem:[#allocation5 + $0x1e0] sm:$0xff]
    %v229 = vld [vmem:[#allocation5 + $0x1e8] sm:$0xff]
    %v230 = vld [vmem:[#allocation5 + $0x1f0] sm:$0xff]
    %v231 = vld [vmem:[#allocation5 + $0x1f8] sm:$0xff]
    %v232 = vld [vmem:[%s4] sm:$0xf]
    %v234 = vlaneseq
    %v235 = vshrl.u32 %v234, 7
    %v236 = vsub.s32 0, %v235
    %v237 = vrot.slane %v232, %v236
    %v238 = vlaneseq
    %v239 = vshrl.u32 %v238, 7
    %v240 = vsub.s32 1, %v239
    %v241 = vrot.slane %v232, %v240
    %v242 = vlaneseq
    %v243 = vshrl.u32 %v242, 7
    %v244 = vsub.s32 2, %v243
    %v245 = vrot.slane %v232, %v244
    %v246 = vlaneseq
    %v247 = vshrl.u32 %v246, 7
    %v248 = vsub.s32 3, %v247
    %v249 = vrot.slane %v232, %v248
    %254 = vmatprep.subr.mxu0 %v169
    %255 = vmatpush1.msra.mxu0 %v168
    %256 = vmatprep.subr.mxu0 %v173
    %257 = vmatpush1.msra.mxu0 %v172
    %258 = vmatprep.subr.mxu0 %v177
    %259 = vmatpush1.msra.mxu0 %v176
    %260 = vmatprep.subr.mxu0 %v181
    %261 = vmatpush1.msra.mxu0 %v180
    %262 = vmatprep.subr.mxu0 %v185
    %263 = vmatpush1.msra.mxu0 %v184
    %264 = vmatprep.subr.mxu0 %v189
    %265 = vmatpush1.msra.mxu0 %v188
    %266 = vmatprep.subr.mxu0 %v193
    %267 = vmatpush1.msra.mxu0 %v192
    %268 = vmatprep.subr.mxu0 %v197
    %269 = vmatpush1.msra.mxu0 %v196
    %270 = vmatprep.subr.mxu0 %v201
    %271 = vmatpush1.msra.mxu0 %v200
    %272 = vmatprep.subr.mxu0 %v205
    %273 = vmatpush1.msra.mxu0 %v204
    %274 = vmatprep.subr.mxu0 %v209
    %275 = vmatpush1.msra.mxu0 %v208
    %276 = vmatprep.subr.mxu0 %v213
    %277 = vmatpush1.msra.mxu0 %v212
    %278 = vmatprep.subr.mxu0 %v217
    %279 = vmatpush1.msra.mxu0 %v216
    %280 = vmatprep.subr.mxu0 %v221
    %281 = vmatpush1.msra.mxu0 %v220
    %282 = vmatprep.subr.mxu0 %v225
    %283 = vmatpush1.msra.mxu0 %v224
    %284 = vmatprep.subr.mxu0 %v229
    %285 = vmatpush1.msra.mxu0 %v228
    %286 = vmatprep.subr.mxu0 0.0
    %287 = vmatpush1.msra.mxu0 0.0
    %288 = vmatprep.subr.mxu0 0.0
    %289 = vmatpush1.msra.mxu0 0.0
    %290 = vmatprep.subr.mxu0 0.0
    %291 = vmatpush1.msra.mxu0 0.0
    %292 = vmatprep.subr.mxu0 0.0
    %293 = vmatpush1.msra.mxu0 0.0
    %294 = vmatprep.subr.mxu0 0.0
    %295 = vmatpush1.msra.mxu0 0.0
    %296 = vmatprep.subr.mxu0 0.0
    %297 = vmatpush1.msra.mxu0 0.0
    %298 = vmatprep.subr.mxu0 0.0
    %299 = vmatpush1.msra.mxu0 0.0
    %300 = vmatprep.subr.mxu0 0.0
    %301 = vmatpush1.msra.mxu0 0.0
    %302 = vmatprep.subr.mxu0 0.0
    %303 = vmatpush1.msra.mxu0 0.0
    %304 = vmatprep.subr.mxu0 0.0
    %305 = vmatpush1.msra.mxu0 0.0
    %306 = vmatprep.subr.mxu0 0.0
    %307 = vmatpush1.msra.mxu0 0.0
    %308 = vmatprep.subr.mxu0 0.0
    %309 = vmatpush1.msra.mxu0 0.0
    %310 = vmatprep.subr.mxu0 0.0
    %311 = vmatpush1.msra.mxu0 0.0
    %312 = vmatprep.subr.mxu0 0.0
    %313 = vmatpush1.msra.mxu0 0.0
    %314 = vmatprep.subr.mxu0 0.0
    %315 = vmatpush1.msra.mxu0 0.0
    %316 = vmatprep.subr.mxu0 0.0
    %317 = vmatpush1.msra.mxu0 0.0
    %318 = vmatprep.mubr.f32.mxu0 0.0
    %319 = vmatmul.mubr.f32.gmra.mrb[0].mxu0 %v167
    %v320 = vpop.f32.mrb[0].mxu0
    %v321 = vadd.f32 %v237, %v320
    %v322 = vpop.f32.mrb[0].mxu0
    %v323 = vadd.f32 %v241, %v322
    %324 = vdwg.mxu0
    %325 = vmatprep.subr.mxu0 %v171
    %326 = vmatpush1.msra.mxu0 %v170
    %327 = vmatprep.subr.mxu0 %v175
    %328 = vmatpush1.msra.mxu0 %v174
    %329 = vmatprep.subr.mxu0 %v179
    %330 = vmatpush1.msra.mxu0 %v178
    %331 = vmatprep.subr.mxu0 %v183
    %332 = vmatpush1.msra.mxu0 %v182
    %333 = vmatprep.subr.mxu0 %v187
    %334 = vmatpush1.msra.mxu0 %v186
    %335 = vmatprep.subr.mxu0 %v191
    %336 = vmatpush1.msra.mxu0 %v190
    %337 = vmatprep.subr.mxu0 %v195
    %338 = vmatpush1.msra.mxu0 %v194
    %339 = vmatprep.subr.mxu0 %v199
    %340 = vmatpush1.msra.mxu0 %v198
    %341 = vmatprep.subr.mxu0 %v203
    %342 = vmatpush1.msra.mxu0 %v202
    %343 = vmatprep.subr.mxu0 %v207
    %344 = vmatpush1.msra.mxu0 %v206
    %345 = vmatprep.subr.mxu0 %v211
    %346 = vmatpush1.msra.mxu0 %v210
    %347 = vmatprep.subr.mxu0 %v215
    %348 = vmatpush1.msra.mxu0 %v214
    %349 = vmatprep.subr.mxu0 %v219
    %350 = vmatpush1.msra.mxu0 %v218
    %351 = vmatprep.subr.mxu0 %v223
    %352 = vmatpush1.msra.mxu0 %v222
    %353 = vmatprep.subr.mxu0 %v227
    %354 = vmatpush1.msra.mxu0 %v226
    %355 = vmatprep.subr.mxu0 %v231
    %356 = vmatpush1.msra.mxu0 %v230
    %357 = vmatprep.subr.mxu0 0.0
    %358 = vmatpush1.msra.mxu0 0.0
    %359 = vmatprep.subr.mxu0 0.0
    %360 = vmatpush1.msra.mxu0 0.0
    %361 = vmatprep.subr.mxu0 0.0
    %362 = vmatpush1.msra.mxu0 0.0
    %363 = vmatprep.subr.mxu0 0.0
    %364 = vmatpush1.msra.mxu0 0.0
    %365 = vmatprep.subr.mxu0 0.0
    %366 = vmatpush1.msra.mxu0 0.0
    %367 = vmatprep.subr.mxu0 0.0
    %368 = vmatpush1.msra.mxu0 0.0
    %369 = vmatprep.subr.mxu0 0.0
    %370 = vmatpush1.msra.mxu0 0.0
    %371 = vmatprep.subr.mxu0 0.0
    %372 = vmatpush1.msra.mxu0 0.0
    %373 = vmatprep.subr.mxu0 0.0
    %374 = vmatpush1.msra.mxu0 0.0
    %375 = vmatprep.subr.mxu0 0.0
    %376 = vmatpush1.msra.mxu0 0.0
    %377 = vmatprep.subr.mxu0 0.0
    %378 = vmatpush1.msra.mxu0 0.0
    %379 = vmatprep.subr.mxu0 0.0
    %380 = vmatpush1.msra.mxu0 0.0
    %381 = vmatprep.subr.mxu0 0.0
    %382 = vmatpush1.msra.mxu0 0.0
    %383 = vmatprep.subr.mxu0 0.0
    %384 = vmatpush1.msra.mxu0 0.0
    %385 = vmatprep.subr.mxu0 0.0
    %386 = vmatpush1.msra.mxu0 0.0
    %387 = vmatprep.subr.mxu0 0.0
    %388 = vmatpush1.msra.mxu0 0.0
    %389 = vmatprep.mubr.f32.mxu0 0.0
    %390 = vmatmul.mubr.f32.gmra.mrb[0].mxu0 %v167
    %v391 = vpop.f32.mrb[0].mxu0
    %v392 = vadd.f32 %v245, %v391
    %v393 = vpop.f32.mrb[0].mxu0
    %v394 = vadd.f32 %v249, %v393
    %395 = vdwg.mxu0
    %v396 = vld [vmem:[#allocation2] sm:$0x3f]
    %v397 = vld [vmem:[#allocation8] sm:$0xff]
    %v398 = vld [vmem:[#allocation8 + $0x8] sm:$0xff]
    %v399 = vld [vmem:[#allocation8 + $0x10] sm:$0xff]
    %v400 = vld [vmem:[#allocation8 + $0x18] sm:$0xff]
    %v401 = vld [vmem:[#allocation8 + $0x20] sm:$0xff]
    %v402 = vld [vmem:[#allocation8 + $0x28] sm:$0xff]
    %v403 = vld [vmem:[#allocation8 + $0x30] sm:$0xff]
    %v404 = vld [vmem:[#allocation8 + $0x38] sm:$0xff]
    %v405 = vld [vmem:[#allocation8 + $0x40] sm:$0xff]
    %v406 = vld [vmem:[#allocation8 + $0x48] sm:$0xff]
    %v407 = vld [vmem:[#allocation8 + $0x50] sm:$0xff]
    %v408 = vld [vmem:[#allocation8 + $0x58] sm:$0xff]
    %v409 = vld [vmem:[#allocation8 + $0x60] sm:$0xff]
    %v410 = vld [vmem:[#allocation8 + $0x68] sm:$0xff]
    %v411 = vld [vmem:[#allocation8 + $0x70] sm:$0xff]
    %v412 = vld [vmem:[#allocation8 + $0x78] sm:$0xff]
    %v413 = vld [vmem:[#allocation8 + $0x80] sm:$0xff]
    %v414 = vld [vmem:[#allocation8 + $0x88] sm:$0xff]
    %v415 = vld [vmem:[#allocation8 + $0x90] sm:$0xff]
    %v416 = vld [vmem:[#allocation8 + $0x98] sm:$0xff]
    %v417 = vld [vmem:[#allocation8 + $0xa0] sm:$0xff]
    %v418 = vld [vmem:[#allocation8 + $0xa8] sm:$0xff]
    %v419 = vld [vmem:[#allocation8 + $0xb0] sm:$0xff]
    %v420 = vld [vmem:[#allocation8 + $0xb8] sm:$0xff]
    %v421 = vld [vmem:[#allocation8 + $0xc0] sm:$0xff]
    %v422 = vld [vmem:[#allocation8 + $0xc8] sm:$0xff]
    %v423 = vld [vmem:[#allocation8 + $0xd0] sm:$0xff]
    %v424 = vld [vmem:[#allocation8 + $0xd8] sm:$0xff]
    %v425 = vld [vmem:[#allocation8 + $0xe0] sm:$0xff]
    %v426 = vld [vmem:[#allocation8 + $0xe8] sm:$0xff]
    %v427 = vld [vmem:[#allocation8 + $0xf0] sm:$0xff]
    %v428 = vld [vmem:[#allocation8 + $0xf8] sm:$0xff]
    %v429 = vld [vmem:[#allocation8 + $0x100] sm:$0xff]
    %v430 = vld [vmem:[#allocation8 + $0x108] sm:$0xff]
    %v431 = vld [vmem:[#allocation8 + $0x110] sm:$0xff]
    %v432 = vld [vmem:[#allocation8 + $0x118] sm:$0xff]
    %v433 = vld [vmem:[#allocation8 + $0x120] sm:$0xff]
    %v434 = vld [vmem:[#allocation8 + $0x128] sm:$0xff]
    %v435 = vld [vmem:[#allocation8 + $0x130] sm:$0xff]
    %v436 = vld [vmem:[#allocation8 + $0x138] sm:$0xff]
    %v437 = vld [vmem:[#allocation8 + $0x140] sm:$0xff]
    %v438 = vld [vmem:[#allocation8 + $0x148] sm:$0xff]
    %v439 = vld [vmem:[#allocation8 + $0x150] sm:$0xff]
    %v440 = vld [vmem:[#allocation8 + $0x158] sm:$0xff]
    %v441 = vld [vmem:[#allocation8 + $0x160] sm:$0xff]
    %v442 = vld [vmem:[#allocation8 + $0x168] sm:$0xff]
    %v443 = vld [vmem:[#allocation8 + $0x170] sm:$0xff]
    %v444 = vld [vmem:[#allocation8 + $0x178] sm:$0xff]
    %v445 = vld [vmem:[#allocation8 + $0x180] sm:$0xff]
    %v446 = vld [vmem:[#allocation8 + $0x188] sm:$0xff]
    %v447 = vld [vmem:[#allocation8 + $0x190] sm:$0xff]
    %v448 = vld [vmem:[#allocation8 + $0x198] sm:$0xff]
    %v449 = vld [vmem:[#allocation8 + $0x1a0] sm:$0xff]
    %v450 = vld [vmem:[#allocation8 + $0x1a8] sm:$0xff]
    %v451 = vld [vmem:[#allocation8 + $0x1b0] sm:$0xff]
    %v452 = vld [vmem:[#allocation8 + $0x1b8] sm:$0xff]
    %v453 = vld [vmem:[#allocation8 + $0x1c0] sm:$0xff]
    %v454 = vld [vmem:[#allocation8 + $0x1c8] sm:$0xff]
    %v455 = vld [vmem:[#allocation8 + $0x1d0] sm:$0xff]
    %v456 = vld [vmem:[#allocation8 + $0x1d8] sm:$0xff]
    %v457 = vld [vmem:[#allocation8 + $0x1e0] sm:$0xff]
    %v458 = vld [vmem:[#allocation8 + $0x1e8] sm:$0xff]
    %v459 = vld [vmem:[#allocation8 + $0x1f0] sm:$0xff]
    %v460 = vld [vmem:[#allocation8 + $0x1f8] sm:$0xff]
    %v461 = vld [vmem:[%s7] sm:$0xf]
    %v463 = vlaneseq
    %v464 = vshrl.u32 %v463, 7
    %v465 = vsub.s32 0, %v464
    %v466 = vrot.slane %v461, %v465
    %v467 = vlaneseq
    %v468 = vshrl.u32 %v467, 7
    %v469 = vsub.s32 1, %v468
    %v470 = vrot.slane %v461, %v469
    %v471 = vlaneseq
    %v472 = vshrl.u32 %v471, 7
    %v473 = vsub.s32 2, %v472
    %v474 = vrot.slane %v461, %v473
    %v475 = vlaneseq
    %v476 = vshrl.u32 %v475, 7
    %v477 = vsub.s32 3, %v476
    %v478 = vrot.slane %v461, %v477
    %483 = vmatprep.subr.mxu0 %v398
    %484 = vmatpush1.msra.mxu0 %v397
    %485 = vmatprep.subr.mxu0 %v402
    %486 = vmatpush1.msra.mxu0 %v401
    %487 = vmatprep.subr.mxu0 %v406
    %488 = vmatpush1.msra.mxu0 %v405
    %489 = vmatprep.subr.mxu0 %v410
    %490 = vmatpush1.msra.mxu0 %v409
    %491 = vmatprep.subr.mxu0 %v414
    %492 = vmatpush1.msra.mxu0 %v413
    %493 = vmatprep.subr.mxu0 %v418
    %494 = vmatpush1.msra.mxu0 %v417
    %495 = vmatprep.subr.mxu0 %v422
    %496 = vmatpush1.msra.mxu0 %v421
    %497 = vmatprep.subr.mxu0 %v426
    %498 = vmatpush1.msra.mxu0 %v425
    %499 = vmatprep.subr.mxu0 %v430
    %500 = vmatpush1.msra.mxu0 %v429
    %501 = vmatprep.subr.mxu0 %v434
    %502 = vmatpush1.msra.mxu0 %v433
    %503 = vmatprep.subr.mxu0 %v438
    %504 = vmatpush1.msra.mxu0 %v437
    %505 = vmatprep.subr.mxu0 %v442
    %506 = vmatpush1.msra.mxu0 %v441
    %507 = vmatprep.subr.mxu0 %v446
    %508 = vmatpush1.msra.mxu0 %v445
    %509 = vmatprep.subr.mxu0 %v450
    %510 = vmatpush1.msra.mxu0 %v449
    %511 = vmatprep.subr.mxu0 %v454
    %512 = vmatpush1.msra.mxu0 %v453
    %513 = vmatprep.subr.mxu0 %v458
    %514 = vmatpush1.msra.mxu0 %v457
    %515 = vmatprep.subr.mxu0 0.0
    %516 = vmatpush1.msra.mxu0 0.0
    %517 = vmatprep.subr.mxu0 0.0
    %518 = vmatpush1.msra.mxu0 0.0
    %519 = vmatprep.subr.mxu0 0.0
    %520 = vmatpush1.msra.mxu0 0.0
    %521 = vmatprep.subr.mxu0 0.0
    %522 = vmatpush1.msra.mxu0 0.0
    %523 = vmatprep.subr.mxu0 0.0
    %524 = vmatpush1.msra.mxu0 0.0
    %525 = vmatprep.subr.mxu0 0.0
    %526 = vmatpush1.msra.mxu0 0.0
    %527 = vmatprep.subr.mxu0 0.0
    %528 = vmatpush1.msra.mxu0 0.0
    %529 = vmatprep.subr.mxu0 0.0
    %530 = vmatpush1.msra.mxu0 0.0
    %531 = vmatprep.subr.mxu0 0.0
    %532 = vmatpush1.msra.mxu0 0.0
    %533 = vmatprep.subr.mxu0 0.0
    %534 = vmatpush1.msra.mxu0 0.0
    %535 = vmatprep.subr.mxu0 0.0
    %536 = vmatpush1.msra.mxu0 0.0
    %537 = vmatprep.subr.mxu0 0.0
    %538 = vmatpush1.msra.mxu0 0.0
    %539 = vmatprep.subr.mxu0 0.0
    %540 = vmatpush1.msra.mxu0 0.0
    %541 = vmatprep.subr.mxu0 0.0
    %542 = vmatpush1.msra.mxu0 0.0
    %543 = vmatprep.subr.mxu0 0.0
    %544 = vmatpush1.msra.mxu0 0.0
    %545 = vmatprep.subr.mxu0 0.0
    %546 = vmatpush1.msra.mxu0 0.0
    %547 = vmatprep.mubr.f32.mxu0 0.0
    %548 = vmatmul.mubr.f32.gmra.mrb[0].mxu0 %v396
    %v549 = vpop.f32.mrb[0].mxu0
    %v550 = vadd.f32 %v466, %v549
    %v551 = vpop.f32.mrb[0].mxu0
    %v552 = vadd.f32 %v470, %v551
    %553 = vdwg.mxu0
    %554 = vmatprep.subr.mxu0 %v400
    %555 = vmatpush1.msra.mxu0 %v399
    %556 = vmatprep.subr.mxu0 %v404
    %557 = vmatpush1.msra.mxu0 %v403
    %558 = vmatprep.subr.mxu0 %v408
    %559 = vmatpush1.msra.mxu0 %v407
    %560 = vmatprep.subr.mxu0 %v412
    %561 = vmatpush1.msra.mxu0 %v411
    %562 = vmatprep.subr.mxu0 %v416
    %563 = vmatpush1.msra.mxu0 %v415
    %564 = vmatprep.subr.mxu0 %v420
    %565 = vmatpush1.msra.mxu0 %v419
    %566 = vmatprep.subr.mxu0 %v424
    %567 = vmatpush1.msra.mxu0 %v423
    %568 = vmatprep.subr.mxu0 %v428
    %569 = vmatpush1.msra.mxu0 %v427
    %570 = vmatprep.subr.mxu0 %v432
    %571 = vmatpush1.msra.mxu0 %v431
    %572 = vmatprep.subr.mxu0 %v436
    %573 = vmatpush1.msra.mxu0 %v435
    %574 = vmatprep.subr.mxu0 %v440
    %575 = vmatpush1.msra.mxu0 %v439
    %576 = vmatprep.subr.mxu0 %v444
    %577 = vmatpush1.msra.mxu0 %v443
    %578 = vmatprep.subr.mxu0 %v448
    %579 = vmatpush1.msra.mxu0 %v447
    %580 = vmatprep.subr.mxu0 %v452
    %581 = vmatpush1.msra.mxu0 %v451
    %582 = vmatprep.subr.mxu0 %v456
    %583 = vmatpush1.msra.mxu0 %v455
    %584 = vmatprep.subr.mxu0 %v460
    %585 = vmatpush1.msra.mxu0 %v459
    %586 = vmatprep.subr.mxu0 0.0
    %587 = vmatpush1.msra.mxu0 0.0
    %588 = vmatprep.subr.mxu0 0.0
    %589 = vmatpush1.msra.mxu0 0.0
    %590 = vmatprep.subr.mxu0 0.0
    %591 = vmatpush1.msra.mxu0 0.0
    %592 = vmatprep.subr.mxu0 0.0
    %593 = vmatpush1.msra.mxu0 0.0
    %594 = vmatprep.subr.mxu0 0.0
    %595 = vmatpush1.msra.mxu0 0.0
    %596 = vmatprep.subr.mxu0 0.0
    %597 = vmatpush1.msra.mxu0 0.0
    %598 = vmatprep.subr.mxu0 0.0
    %599 = vmatpush1.msra.mxu0 0.0
    %600 = vmatprep.subr.mxu0 0.0
    %601 = vmatpush1.msra.mxu0 0.0
    %602 = vmatprep.subr.mxu0 0.0
    %603 = vmatpush1.msra.mxu0 0.0
    %604 = vmatprep.subr.mxu0 0.0
    %605 = vmatpush1.msra.mxu0 0.0
    %606 = vmatprep.subr.mxu0 0.0
    %607 = vmatpush1.msra.mxu0 0.0
    %608 = vmatprep.subr.mxu0 0.0
    %609 = vmatpush1.msra.mxu0 0.0
    %610 = vmatprep.subr.mxu0 0.0
    %611 = vmatpush1.msra.mxu0 0.0
    %612 = vmatprep.subr.mxu0 0.0
    %613 = vmatpush1.msra.mxu0 0.0
    %614 = vmatprep.subr.mxu0 0.0
    %615 = vmatpush1.msra.mxu0 0.0
    %616 = vmatprep.subr.mxu0 0.0
    %617 = vmatpush1.msra.mxu0 0.0
    %618 = vmatprep.mubr.f32.mxu0 0.0
    %619 = vmatmul.mubr.f32.gmra.mrb[0].mxu0 %v396
    %v620 = vpop.f32.mrb[0].mxu0
    %v621 = vadd.f32 %v474, %v620
    %v622 = vpop.f32.mrb[0].mxu0
    %v623 = vadd.f32 %v478, %v622
    %624 = vdwg.mxu0
    %v625 = vld [vmem:[#allocation7] sm:$0xff]
    %v626 = vld [vmem:[#allocation7 + $0x8] sm:$0xff]
    %v627 = vld [vmem:[#allocation7 + $0x10] sm:$0xff]
    %v628 = vld [vmem:[#allocation7 + $0x18] sm:$0xff]
    %v629 = vld [vmem:[#allocation7 + $0x20] sm:$0xff]
    %v630 = vld [vmem:[#allocation7 + $0x28] sm:$0xff]
    %v631 = vld [vmem:[#allocation7 + $0x30] sm:$0xff]
    %v632 = vld [vmem:[#allocation7 + $0x38] sm:$0xff]
    %v633 = vld [vmem:[#allocation7 + $0x40] sm:$0xff]
    %v634 = vld [vmem:[#allocation7 + $0x48] sm:$0xff]
    %v635 = vld [vmem:[#allocation7 + $0x50] sm:$0xff]
    %v636 = vld [vmem:[#allocation7 + $0x58] sm:$0xff]
    %v637 = vld [vmem:[#allocation7 + $0x60] sm:$0xff]
    %v638 = vld [vmem:[#allocation7 + $0x68] sm:$0xff]
    %v639 = vld [vmem:[#allocation7 + $0x70] sm:$0xff]
    %v640 = vld [vmem:[#allocation7 + $0x78] sm:$0xff]
    %v641 = vld [vmem:[#allocation7 + $0x80] sm:$0xff]
    %v642 = vld [vmem:[#allocation7 + $0x88] sm:$0xff]
    %v643 = vld [vmem:[#allocation7 + $0x90] sm:$0xff]
    %v644 = vld [vmem:[#allocation7 + $0x98] sm:$0xff]
    %v645 = vld [vmem:[#allocation7 + $0xa0] sm:$0xff]
    %v646 = vld [vmem:[#allocation7 + $0xa8] sm:$0xff]
    %v647 = vld [vmem:[#allocation7 + $0xb0] sm:$0xff]
    %v648 = vld [vmem:[#allocation7 + $0xb8] sm:$0xff]
    %v649 = vld [vmem:[#allocation7 + $0xc0] sm:$0xff]
    %v650 = vld [vmem:[#allocation7 + $0xc8] sm:$0xff]
    %v651 = vld [vmem:[#allocation7 + $0xd0] sm:$0xff]
    %v652 = vld [vmem:[#allocation7 + $0xd8] sm:$0xff]
    %v653 = vld [vmem:[#allocation7 + $0xe0] sm:$0xff]
    %v654 = vld [vmem:[#allocation7 + $0xe8] sm:$0xff]
    %v655 = vld [vmem:[#allocation7 + $0xf0] sm:$0xff]
    %v656 = vld [vmem:[#allocation7 + $0xf8] sm:$0xff]
    %v657 = vld [vmem:[#allocation7 + $0x100] sm:$0xff]
    %v658 = vld [vmem:[#allocation7 + $0x108] sm:$0xff]
    %v659 = vld [vmem:[#allocation7 + $0x110] sm:$0xff]
    %v660 = vld [vmem:[#allocation7 + $0x118] sm:$0xff]
    %v661 = vld [vmem:[#allocation7 + $0x120] sm:$0xff]
    %v662 = vld [vmem:[#allocation7 + $0x128] sm:$0xff]
    %v663 = vld [vmem:[#allocation7 + $0x130] sm:$0xff]
    %v664 = vld [vmem:[#allocation7 + $0x138] sm:$0xff]
    %v665 = vld [vmem:[#allocation7 + $0x140] sm:$0xff]
    %v666 = vld [vmem:[#allocation7 + $0x148] sm:$0xff]
    %v667 = vld [vmem:[#allocation7 + $0x150] sm:$0xff]
    %v668 = vld [vmem:[#allocation7 + $0x158] sm:$0xff]
    %v669 = vld [vmem:[#allocation7 + $0x160] sm:$0xff]
    %v670 = vld [vmem:[#allocation7 + $0x168] sm:$0xff]
    %v671 = vld [vmem:[#allocation7 + $0x170] sm:$0xff]
    %v672 = vld [vmem:[#allocation7 + $0x178] sm:$0xff]
    %v673 = vld [vmem:[#allocation7 + $0x180] sm:$0xff]
    %v674 = vld [vmem:[#allocation7 + $0x188] sm:$0xff]
    %v675 = vld [vmem:[#allocation7 + $0x190] sm:$0xff]
    %v676 = vld [vmem:[#allocation7 + $0x198] sm:$0xff]
    %v677 = vld [vmem:[#allocation7 + $0x1a0] sm:$0xff]
    %v678 = vld [vmem:[#allocation7 + $0x1a8] sm:$0xff]
    %v679 = vld [vmem:[#allocation7 + $0x1b0] sm:$0xff]
    %v680 = vld [vmem:[#allocation7 + $0x1b8] sm:$0xff]
    %v681 = vld [vmem:[#allocation7 + $0x1c0] sm:$0xff]
    %v682 = vld [vmem:[#allocation7 + $0x1c8] sm:$0xff]
    %v683 = vld [vmem:[#allocation7 + $0x1d0] sm:$0xff]
    %v684 = vld [vmem:[#allocation7 + $0x1d8] sm:$0xff]
    %v685 = vld [vmem:[#allocation7 + $0x1e0] sm:$0xff]
    %v686 = vld [vmem:[#allocation7 + $0x1e8] sm:$0xff]
    %v687 = vld [vmem:[#allocation7 + $0x1f0] sm:$0xff]
    %v688 = vld [vmem:[#allocation7 + $0x1f8] sm:$0xff]
    %v689 = vld [vmem:[#allocation10] sm:$0xff]
    %v690 = vld [vmem:[#allocation10 + $0x8] sm:$0xff]
    %v691 = vld [vmem:[#allocation10 + $0x10] sm:$0xff]
    %v692 = vld [vmem:[#allocation10 + $0x18] sm:$0xff]
    %v693 = vld [vmem:[#allocation10 + $0x20] sm:$0xff]
    %v694 = vld [vmem:[#allocation10 + $0x28] sm:$0xff]
    %v695 = vld [vmem:[#allocation10 + $0x30] sm:$0xff]
    %v696 = vld [vmem:[#allocation10 + $0x38] sm:$0xff]
    %v697 = vld [vmem:[#allocation10 + $0x40] sm:$0xff]
    %v698 = vld [vmem:[#allocation10 + $0x48] sm:$0xff]
    %v699 = vld [vmem:[#allocation10 + $0x50] sm:$0xff]
    %v700 = vld [vmem:[#allocation10 + $0x58] sm:$0xff]
    %v701 = vld [vmem:[#allocation10 + $0x60] sm:$0xff]
    %v702 = vld [vmem:[#allocation10 + $0x68] sm:$0xff]
    %v703 = vld [vmem:[#allocation10 + $0x70] sm:$0xff]
    %v704 = vld [vmem:[#allocation10 + $0x78] sm:$0xff]
    %v705 = vld [vmem:[#allocation10 + $0x80] sm:$0xff]
    %v706 = vld [vmem:[#allocation10 + $0x88] sm:$0xff]
    %v707 = vld [vmem:[#allocation10 + $0x90] sm:$0xff]
    %v708 = vld [vmem:[#allocation10 + $0x98] sm:$0xff]
    %v709 = vld [vmem:[#allocation10 + $0xa0] sm:$0xff]
    %v710 = vld [vmem:[#allocation10 + $0xa8] sm:$0xff]
    %v711 = vld [vmem:[#allocation10 + $0xb0] sm:$0xff]
    %v712 = vld [vmem:[#allocation10 + $0xb8] sm:$0xff]
    %v713 = vld [vmem:[#allocation10 + $0xc0] sm:$0xff]
    %v714 = vld [vmem:[#allocation10 + $0xc8] sm:$0xff]
    %v715 = vld [vmem:[#allocation10 + $0xd0] sm:$0xff]
    %v716 = vld [vmem:[#allocation10 + $0xd8] sm:$0xff]
    %v717 = vld [vmem:[#allocation10 + $0xe0] sm:$0xff]
    %v718 = vld [vmem:[#allocation10 + $0xe8] sm:$0xff]
    %v719 = vld [vmem:[#allocation10 + $0xf0] sm:$0xff]
    %v720 = vld [vmem:[#allocation10 + $0xf8] sm:$0xff]
    %v721 = vld [vmem:[#allocation10 + $0x100] sm:$0xff]
    %v722 = vld [vmem:[#allocation10 + $0x108] sm:$0xff]
    %v723 = vld [vmem:[#allocation10 + $0x110] sm:$0xff]
    %v724 = vld [vmem:[#allocation10 + $0x118] sm:$0xff]
    %v725 = vld [vmem:[#allocation10 + $0x120] sm:$0xff]
    %v726 = vld [vmem:[#allocation10 + $0x128] sm:$0xff]
    %v727 = vld [vmem:[#allocation10 + $0x130] sm:$0xff]
    %v728 = vld [vmem:[#allocation10 + $0x138] sm:$0xff]
    %v729 = vld [vmem:[#allocation10 + $0x140] sm:$0xff]
    %v730 = vld [vmem:[#allocation10 + $0x148] sm:$0xff]
    %v731 = vld [vmem:[#allocation10 + $0x150] sm:$0xff]
    %v732 = vld [vmem:[#allocation10 + $0x158] sm:$0xff]
    %v733 = vld [vmem:[#allocation10 + $0x160] sm:$0xff]
    %v734 = vld [vmem:[#allocation10 + $0x168] sm:$0xff]
    %v735 = vld [vmem:[#allocation10 + $0x170] sm:$0xff]
    %v736 = vld [vmem:[#allocation10 + $0x178] sm:$0xff]
    %v737 = vld [vmem:[#allocation10 + $0x180] sm:$0xff]
    %v738 = vld [vmem:[#allocation10 + $0x188] sm:$0xff]
    %v739 = vld [vmem:[#allocation10 + $0x190] sm:$0xff]
    %v740 = vld [vmem:[#allocation10 + $0x198] sm:$0xff]
    %v741 = vld [vmem:[#allocation10 + $0x1a0] sm:$0xff]
    %v742 = vld [vmem:[#allocation10 + $0x1a8] sm:$0xff]
    %v743 = vld [vmem:[#allocation10 + $0x1b0] sm:$0xff]
    %v744 = vld [vmem:[#allocation10 + $0x1b8] sm:$0xff]
    %v745 = vld [vmem:[#allocation10 + $0x1c0] sm:$0xff]
    %v746 = vld [vmem:[#allocation10 + $0x1c8] sm:$0xff]
    %v747 = vld [vmem:[#allocation10 + $0x1d0] sm:$0xff]
    %v748 = vld [vmem:[#allocation10 + $0x1d8] sm:$0xff]
    %v749 = vld [vmem:[#allocation10 + $0x1e0] sm:$0xff]
    %v750 = vld [vmem:[#allocation10 + $0x1e8] sm:$0xff]
    %v751 = vld [vmem:[#allocation10 + $0x1f0] sm:$0xff]
    %v752 = vld [vmem:[#allocation10 + $0x1f8] sm:$0xff]
    %v753 = vxor.u32 %v321, 2147483648
    %v754 = vmul.f32 %v753, 1.442695
    %v755 = vpow.pop %v754
    %v756 = vadd.f32 %v755, 1.0
    %v757 = vrcp.pop %v756
    %v758 = vmul.f32 1.0, %v757
    %v759 = vxor.u32 %v323, 2147483648
    %v760 = vmul.f32 %v759, 1.442695
    %v761 = vpow.pop %v760
    %v762 = vadd.f32 %v761, 1.0
    %v763 = vrcp.pop %v762
    %v764 = vmul.f32 1.0, %v763
    %v765 = vtanh.pop %v392
    %v766 = vxor.u32 %v394, 2147483648
    %v767 = vmul.f32 %v766, 1.442695
    %v768 = vpow.pop %v767
    %v769 = vadd.f32 %v768, 1.0
    %v770 = vrcp.pop %v769
    %v771 = vmul.f32 1.0, %v770
    %v772 = vmul.f32 %v764, 0.0
    %v773 = vmul.f32 %v758, %v765
    %v774 = vadd.f32 %v772, %v773
    %v775 = vtanh.pop %v774
    %v776 = vmul.f32 %v771, %v775
    %v777 = vxor.u32 %v550, 2147483648
    %v778 = vmul.f32 %v777, 1.442695
    %v779 = vpow.pop %v778
    %v780 = vadd.f32 %v779, 1.0
    %v781 = vrcp.pop %v780
    %v782 = vmul.f32 1.0, %v781
    %v783 = vxor.u32 %v552, 2147483648
    %v784 = vmul.f32 %v783, 1.442695
    %v785 = vpow.pop %v784
    %v786 = vadd.f32 %v785, 1.0
    %v787 = vrcp.pop %v786
    %v788 = vmul.f32 1.0, %v787
    %v789 = vtanh.pop %v621
    %v790 = vxor.u32 %v623, 2147483648
    %v791 = vmul.f32 %v790, 1.442695
    %v792 = vpow.pop %v791
    %v793 = vadd.f32 %v792, 1.0
    %v794 = vrcp.pop %v793
    %v795 = vmul.f32 1.0, %v794
    %v796 = vmul.f32 %v788, 0.0
    %v797 = vmul.f32 %v782, %v789
    %v798 = vadd.f32 %v796, %v797
    %v799 = vtanh.pop %v798
    %v800 = vmul.f32 %v795, %v799
    %801 = vmatprep.subr.mxu0 %v626
    %802 = vmatpush1.msra.mxu0 %v625
    %803 = vmatprep.subr.mxu0 %v630
    %804 = vmatpush1.msra.mxu0 %v629
    %805 = vmatprep.subr.mxu0 %v634
    %806 = vmatpush1.msra.mxu0 %v633
    %807 = vmatprep.subr.mxu0 %v638
    %808 = vmatpush1.msra.mxu0 %v637
    %809 = vmatprep.subr.mxu0 %v642
    %810 = vmatpush1.msra.mxu0 %v641
    %811 = vmatprep.subr.mxu0 %v646
    %812 = vmatpush1.msra.mxu0 %v645
    %813 = vmatprep.subr.mxu0 %v650
    %814 = vmatpush1.msra.mxu0 %v649
    %815 = vmatprep.subr.mxu0 %v654
    %816 = vmatpush1.msra.mxu0 %v653
    %817 = vmatprep.subr.mxu0 %v658
    %818 = vmatpush1.msra.mxu0 %v657
    %819 = vmatprep.subr.mxu0 %v662
    %820 = vmatpush1.msra.mxu0 %v661
    %821 = vmatprep.subr.mxu0 %v666
    %822 = vmatpush1.msra.mxu0 %v665
    %823 = vmatprep.subr.mxu0 %v670
    %824 = vmatpush1.msra.mxu0 %v669
    %825 = vmatprep.subr.mxu0 %v674
    %826 = vmatpush1.msra.mxu0 %v673
    %827 = vmatprep.subr.mxu0 %v678
    %828 = vmatpush1.msra.mxu0 %v677
    %829 = vmatprep.subr.mxu0 %v682
    %830 = vmatpush1.msra.mxu0 %v681
    %831 = vmatprep.subr.mxu0 %v686
    %832 = vmatpush1.msra.mxu0 %v685
    %833 = vmatprep.subr.mxu0 0.0
    %834 = vmatpush1.msra.mxu0 0.0
    %835 = vmatprep.subr.mxu0 0.0
    %836 = vmatpush1.msra.mxu0 0.0
    %837 = vmatprep.subr.mxu0 0.0
    %838 = vmatpush1.msra.mxu0 0.0
    %839 = vmatprep.subr.mxu0 0.0
    %840 = vmatpush1.msra.mxu0 0.0
    %841 = vmatprep.subr.mxu0 0.0
    %842 = vmatpush1.msra.mxu0 0.0
    %843 = vmatprep.subr.mxu0 0.0
    %844 = vmatpush1.msra.mxu0 0.0
    %845 = vmatprep.subr.mxu0 0.0
    %846 = vmatpush1.msra.mxu0 0.0
    %847 = vmatprep.subr.mxu0 0.0
    %848 = vmatpush1.msra.mxu0 0.0
    %849 = vmatprep.subr.mxu0 0.0
    %850 = vmatpush1.msra.mxu0 0.0
    %851 = vmatprep.subr.mxu0 0.0
    %852 = vmatpush1.msra.mxu0 0.0
    %853 = vmatprep.subr.mxu0 0.0
    %854 = vmatpush1.msra.mxu0 0.0
    %855 = vmatprep.subr.mxu0 0.0
    %856 = vmatpush1.msra.mxu0 0.0
    %857 = vmatprep.subr.mxu0 0.0
    %858 = vmatpush1.msra.mxu0 0.0
    %859 = vmatprep.subr.mxu0 0.0
    %860 = vmatpush1.msra.mxu0 0.0
    %861 = vmatprep.subr.mxu0 0.0
    %862 = vmatpush1.msra.mxu0 0.0
    %863 = vmatprep.subr.mxu0 0.0
    %864 = vmatpush1.msra.mxu0 0.0
    %865 = vmatprep.mubr.f32.mxu0 0.0
    %866 = vmatmul.mubr.f32.gmra.mrb[0].mxu0 %v776
    %v867 = vpop.f32.mrb[0].mxu0
    %v868 = vadd.f32 0.0, %v867
    %v869 = vpop.f32.mrb[0].mxu0
    %v870 = vadd.f32 0.0, %v869
    %871 = vdwg.mxu0
    %872 = vmatprep.subr.mxu0 %v628
    %873 = vmatpush1.msra.mxu0 %v627
    %874 = vmatprep.subr.mxu0 %v632
    %875 = vmatpush1.msra.mxu0 %v631
    %876 = vmatprep.subr.mxu0 %v636
    %877 = vmatpush1.msra.mxu0 %v635
    %878 = vmatprep.subr.mxu0 %v640
    %879 = vmatpush1.msra.mxu0 %v639
    %880 = vmatprep.subr.mxu0 %v644
    %881 = vmatpush1.msra.mxu0 %v643
    %882 = vmatprep.subr.mxu0 %v648
    %883 = vmatpush1.msra.mxu0 %v647
    %884 = vmatprep.subr.mxu0 %v652
    %885 = vmatpush1.msra.mxu0 %v651
    %886 = vmatprep.subr.mxu0 %v656
    %887 = vmatpush1.msra.mxu0 %v655
    %888 = vmatprep.subr.mxu0 %v660
    %889 = vmatpush1.msra.mxu0 %v659
    %890 = vmatprep.subr.mxu0 %v664
    %891 = vmatpush1.msra.mxu0 %v663
    %892 = vmatprep.subr.mxu0 %v668
    %893 = vmatpush1.msra.mxu0 %v667
    %894 = vmatprep.subr.mxu0 %v672
    %895 = vmatpush1.msra.mxu0 %v671
    %896 = vmatprep.subr.mxu0 %v676
    %897 = vmatpush1.msra.mxu0 %v675
    %898 = vmatprep.subr.mxu0 %v680
    %899 = vmatpush1.msra.mxu0 %v679
    %900 = vmatprep.subr.mxu0 %v684
    %901 = vmatpush1.msra.mxu0 %v683
    %902 = vmatprep.subr.mxu0 %v688
    %903 = vmatpush1.msra.mxu0 %v687
    %904 = vmatprep.subr.mxu0 0.0
    %905 = vmatpush1.msra.mxu0 0.0
    %906 = vmatprep.subr.mxu0 0.0
    %907 = vmatpush1.msra.mxu0 0.0
    %908 = vmatprep.subr.mxu0 0.0
    %909 = vmatpush1.msra.mxu0 0.0
    %910 = vmatprep.subr.mxu0 0.0
    %911 = vmatpush1.msra.mxu0 0.0
    %912 = vmatprep.subr.mxu0 0.0
    %913 = vmatpush1.msra.mxu0 0.0
    %914 = vmatprep.subr.mxu0 0.0
    %915 = vmatpush1.msra.mxu0 0.0
    %916 = vmatprep.subr.mxu0 0.0
    %917 = vmatpush1.msra.mxu0 0.0
    %918 = vmatprep.subr.mxu0 0.0
    %919 = vmatpush1.msra.mxu0 0.0
    %920 = vmatprep.subr.mxu0 0.0
    %921 = vmatpush1.msra.mxu0 0.0
    %922 = vmatprep.subr.mxu0 0.0
    %923 = vmatpush1.msra.mxu0 0.0
    %924 = vmatprep.subr.mxu0 0.0
    %925 = vmatpush1.msra.mxu0 0.0
    %926 = vmatprep.subr.mxu0 0.0
    %927 = vmatpush1.msra.mxu0 0.0
    %928 = vmatprep.subr.mxu0 0.0
    %929 = vmatpush1.msra.mxu0 0.0
    %930 = vmatprep.subr.mxu0 0.0
    %931 = vmatpush1.msra.mxu0 0.0
    %932 = vmatprep.subr.mxu0 0.0
    %933 = vmatpush1.msra.mxu0 0.0
    %934 = vmatprep.subr.mxu0 0.0
    %935 = vmatpush1.msra.mxu0 0.0
    %936 = vmatprep.mubr.f32.mxu0 0.0
    %937 = vmatmul.mubr.f32.gmra.mrb[0].mxu0 %v776
    %v938 = vpop.f32.mrb[0].mxu0
    %v939 = vadd.f32 0.0, %v938
    %v940 = vpop.f32.mrb[0].mxu0
    %v941 = vadd.f32 0.0, %v940
    %942 = vdwg.mxu0
    %v947 = vrot.slane %v868, 6
    %v948 = vrot.slane %v870, 6
    %v949 = vrot.slane %v939, 6
    %v950 = vrot.slane %v941, 6
    %v955 = vadd.f32 %v321, %v947
    %v956 = vadd.f32 %v323, %v948
    %v957 = vadd.f32 %v392, %v949
    %v958 = vadd.f32 %v394, %v950
    %v959 = vxor.u32 %v955, 2147483648
    %v960 = vmul.f32 %v959, 1.442695
    %v961 = vpow.pop %v960
    %v962 = vadd.f32 %v961, 1.0
    %v963 = vrcp.pop %v962
    %v964 = vmul.f32 1.0, %v963
    %v965 = vxor.u32 %v956, 2147483648
    %v966 = vmul.f32 %v965, 1.442695
    %v967 = vpow.pop %v966
    %v968 = vadd.f32 %v967, 1.0
    %v969 = vrcp.pop %v968
    %v970 = vmul.f32 1.0, %v969
    %v971 = vtanh.pop %v957
    %v972 = vxor.u32 %v958, 2147483648
    %v973 = vmul.f32 %v972, 1.442695
    %v974 = vpow.pop %v973
    %v975 = vadd.f32 %v974, 1.0
    %v976 = vrcp.pop %v975
    %v977 = vmul.f32 1.0, %v976
    %v979 = vrot.slane %v774, 6
    %v981 = vmul.f32 %v970, %v979
    %v982 = vmul.f32 %v964, %v971
    %v983 = vadd.f32 %v981, %v982
    %v984 = vtanh.pop %v983
    %v985 = vmul.f32 %v977, %v984
    %986 = vmatprep.subr.mxu0 %v690
    %987 = vmatpush1.msra.mxu0 %v689
    %988 = vmatprep.subr.mxu0 %v694
    %989 = vmatpush1.msra.mxu0 %v693
    %990 = vmatprep.subr.mxu0 %v698
    %991 = vmatpush1.msra.mxu0 %v697
    %992 = vmatprep.subr.mxu0 %v702
    %993 = vmatpush1.msra.mxu0 %v701
    %994 = vmatprep.subr.mxu0 %v706
    %995 = vmatpush1.msra.mxu0 %v705
    %996 = vmatprep.subr.mxu0 %v710
    %997 = vmatpush1.msra.mxu0 %v709
    %998 = vmatprep.subr.mxu0 %v714
    %999 = vmatpush1.msra.mxu0 %v713
    %1000 = vmatprep.subr.mxu0 %v718
    %1001 = vmatpush1.msra.mxu0 %v717
    %1002 = vmatprep.subr.mxu0 %v722
    %1003 = vmatpush1.msra.mxu0 %v721
    %1004 = vmatprep.subr.mxu0 %v726
    %1005 = vmatpush1.msra.mxu0 %v725
    %1006 = vmatprep.subr.mxu0 %v730
    %1007 = vmatpush1.msra.mxu0 %v729
    %1008 = vmatprep.subr.mxu0 %v734
    %1009 = vmatpush1.msra.mxu0 %v733
    %1010 = vmatprep.subr.mxu0 %v738
    %1011 = vmatpush1.msra.mxu0 %v737
    %1012 = vmatprep.subr.mxu0 %v742
    %1013 = vmatpush1.msra.mxu0 %v741
    %1014 = vmatprep.subr.mxu0 %v746
    %1015 = vmatpush1.msra.mxu0 %v745
    %1016 = vmatprep.subr.mxu0 %v750
    %1017 = vmatpush1.msra.mxu0 %v749
    %1018 = vmatprep.subr.mxu0 0.0
    %1019 = vmatpush1.msra.mxu0 0.0
    %1020 = vmatprep.subr.mxu0 0.0
    %1021 = vmatpush1.msra.mxu0 0.0
    %1022 = vmatprep.subr.mxu0 0.0
    %1023 = vmatpush1.msra.mxu0 0.0
    %1024 = vmatprep.subr.mxu0 0.0
    %1025 = vmatpush1.msra.mxu0 0.0
    %1026 = vmatprep.subr.mxu0 0.0
    %1027 = vmatpush1.msra.mxu0 0.0
    %1028 = vmatprep.subr.mxu0 0.0
    %1029 = vmatpush1.msra.mxu0 0.0
    %1030 = vmatprep.subr.mxu0 0.0
    %1031 = vmatpush1.msra.mxu0 0.0
    %1032 = vmatprep.subr.mxu0 0.0
    %1033 = vmatpush1.msra.mxu0 0.0
    %1034 = vmatprep.subr.mxu0 0.0
    %1035 = vmatpush1.msra.mxu0 0.0
    %1036 = vmatprep.subr.mxu0 0.0
    %1037 = vmatpush1.msra.mxu0 0.0
    %1038 = vmatprep.subr.mxu0 0.0
    %1039 = vmatpush1.msra.mxu0 0.0
    %1040 = vmatprep.subr.mxu0 0.0
    %1041 = vmatpush1.msra.mxu0 0.0
    %1042 = vmatprep.subr.mxu0 0.0
    %1043 = vmatpush1.msra.mxu0 0.0
    %1044 = vmatprep.subr.mxu0 0.0
    %1045 = vmatpush1.msra.mxu0 0.0
    %1046 = vmatprep.subr.mxu0 0.0
    %1047 = vmatpush1.msra.mxu0 0.0
    %1048 = vmatprep.subr.mxu0 0.0
    %1049 = vmatpush1.msra.mxu0 0.0
    %1050 = vmatprep.mubr.f32.mxu0 0.0
    %1051 = vmatmul.mubr.f32.gmra.mrb[0].mxu0 %v800
    %v1052 = vpop.f32.mrb[0].mxu0
    %v1053 = vadd.f32 0.0, %v1052
    %v1054 = vpop.f32.mrb[0].mxu0
    %v1055 = vadd.f32 0.0, %v1054
    %1056 = vdwg.mxu0
    %1057 = vmatprep.subr.mxu0 %v692
    %1058 = vmatpush1.msra.mxu0 %v691
    %1059 = vmatprep.subr.mxu0 %v696
    %1060 = vmatpush1.msra.mxu0 %v695
    %1061 = vmatprep.subr.mxu0 %v700
    %1062 = vmatpush1.msra.mxu0 %v699
    %1063 = vmatprep.subr.mxu0 %v704
    %1064 = vmatpush1.msra.mxu0 %v703
    %1065 = vmatprep.subr.mxu0 %v708
    %1066 = vmatpush1.msra.mxu0 %v707
    %1067 = vmatprep.subr.mxu0 %v712
    %1068 = vmatpush1.msra.mxu0 %v711
    %1069 = vmatprep.subr.mxu0 %v716
    %1070 = vmatpush1.msra.mxu0 %v715
    %1071 = vmatprep.subr.mxu0 %v720
    %1072 = vmatpush1.msra.mxu0 %v719
    %1073 = vmatprep.subr.mxu0 %v724
    %1074 = vmatpush1.msra.mxu0 %v723
    %1075 = vmatprep.subr.mxu0 %v728
    %1076 = vmatpush1.msra.mxu0 %v727
    %1077 = vmatprep.subr.mxu0 %v732
    %1078 = vmatpush1.msra.mxu0 %v731
    %1079 = vmatprep.subr.mxu0 %v736
    %1080 = vmatpush1.msra.mxu0 %v735
    %1081 = vmatprep.subr.mxu0 %v740
    %1082 = vmatpush1.msra.mxu0 %v739
    %1083 = vmatprep.subr.mxu0 %v744
    %1084 = vmatpush1.msra.mxu0 %v743
    %1085 = vmatprep.subr.mxu0 %v748
    %1086 = vmatpush1.msra.mxu0 %v747
    %1087 = vmatprep.subr.mxu0 %v752
    %1088 = vmatpush1.msra.mxu0 %v751
    %1089 = vmatprep.subr.mxu0 0.0
    %1090 = vmatpush1.msra.mxu0 0.0
    %1091 = vmatprep.subr.mxu0 0.0
    %1092 = vmatpush1.msra.mxu0 0.0
    %1093 = vmatprep.subr.mxu0 0.0
    %1094 = vmatpush1.msra.mxu0 0.0
    %1095 = vmatprep.subr.mxu0 0.0
    %1096 = vmatpush1.msra.mxu0 0.0
    %1097 = vmatprep.subr.mxu0 0.0
    %1098 = vmatpush1.msra.mxu0 0.0
    %1099 = vmatprep.subr.mxu0 0.0
    %1100 = vmatpush1.msra.mxu0 0.0
    %1101 = vmatprep.subr.mxu0 0.0
    %1102 = vmatpush1.msra.mxu0 0.0
    %1103 = vmatprep.subr.mxu0 0.0
    %1104 = vmatpush1.msra.mxu0 0.0
    %1105 = vmatprep.subr.mxu0 0.0
    %1106 = vmatpush1.msra.mxu0 0.0
    %1107 = vmatprep.subr.mxu0 0.0
    %1108 = vmatpush1.msra.mxu0 0.0
    %1109 = vmatprep.subr.mxu0 0.0
    %1110 = vmatpush1.msra.mxu0 0.0
    %1111 = vmatprep.subr.mxu0 0.0
    %1112 = vmatpush1.msra.mxu0 0.0
    %1113 = vmatprep.subr.mxu0 0.0
    %1114 = vmatpush1.msra.mxu0 0.0
    %1115 = vmatprep.subr.mxu0 0.0
    %1116 = vmatpush1.msra.mxu0 0.0
    %1117 = vmatprep.subr.mxu0 0.0
    %1118 = vmatpush1.msra.mxu0 0.0
    %1119 = vmatprep.subr.mxu0 0.0
    %1120 = vmatpush1.msra.mxu0 0.0
    %1121 = vmatprep.mubr.f32.mxu0 0.0
    %1122 = vmatmul.mubr.f32.gmra.mrb[0].mxu0 %v800
    %v1123 = vpop.f32.mrb[0].mxu0
    %v1124 = vadd.f32 0.0, %v1123
    %v1125 = vpop.f32.mrb[0].mxu0
    %v1126 = vadd.f32 0.0, %v1125
    %1127 = vdwg.mxu0
    %v1132 = vrot.slane %v1053, 6
    %v1133 = vrot.slane %v1055, 6
    %v1134 = vrot.slane %v1124, 6
    %v1135 = vrot.slane %v1126, 6
    %v1140 = vadd.f32 %v550, %v1132
    %v1141 = vadd.f32 %v552, %v1133
    %v1142 = vadd.f32 %v621, %v1134
    %v1143 = vadd.f32 %v623, %v1135
    %v1144 = vxor.u32 %v1140, 2147483648
    %v1145 = vmul.f32 %v1144, 1.442695
    %v1146 = vpow.pop %v1145
    %v1147 = vadd.f32 %v1146, 1.0
    %v1148 = vrcp.pop %v1147
    %v1149 = vmul.f32 1.0, %v1148
    %v1150 = vxor.u32 %v1141, 2147483648
    %v1151 = vmul.f32 %v1150, 1.442695
    %v1152 = vpow.pop %v1151
    %v1153 = vadd.f32 %v1152, 1.0
    %v1154 = vrcp.pop %v1153
    %v1155 = vmul.f32 1.0, %v1154
    %v1156 = vtanh.pop %v1142
    %v1157 = vxor.u32 %v1143, 2147483648
    %v1158 = vmul.f32 %v1157, 1.442695
    %v1159 = vpow.pop %v1158
    %v1160 = vadd.f32 %v1159, 1.0
    %v1161 = vrcp.pop %v1160
    %v1162 = vmul.f32 1.0, %v1161
    %v1164 = vrot.slane %v798, 6
    %v1166 = vmul.f32 %v1155, %v1164
    %v1167 = vmul.f32 %v1149, %v1156
    %v1168 = vadd.f32 %v1166, %v1167
    %v1169 = vtanh.pop %v1168
    %v1170 = vmul.f32 %v1162, %v1169
    %v1172 = vrot.slane %v985, 2
    %1174 = vmatprep.subr.mxu0 %v626
    %1175 = vmatpush1.msra.mxu0 %v625
    %1176 = vmatprep.subr.mxu0 %v630
    %1177 = vmatpush1.msra.mxu0 %v629
    %1178 = vmatprep.subr.mxu0 %v634
    %1179 = vmatpush1.msra.mxu0 %v633
    %1180 = vmatprep.subr.mxu0 %v638
    %1181 = vmatpush1.msra.mxu0 %v637
    %1182 = vmatprep.subr.mxu0 %v642
    %1183 = vmatpush1.msra.mxu0 %v641
    %1184 = vmatprep.subr.mxu0 %v646
    %1185 = vmatpush1.msra.mxu0 %v645
    %1186 = vmatprep.subr.mxu0 %v650
    %1187 = vmatpush1.msra.mxu0 %v649
    %1188 = vmatprep.subr.mxu0 %v654
    %1189 = vmatpush1.msra.mxu0 %v653
    %1190 = vmatprep.subr.mxu0 %v658
    %1191 = vmatpush1.msra.mxu0 %v657
    %1192 = vmatprep.subr.mxu0 %v662
    %1193 = vmatpush1.msra.mxu0 %v661
    %1194 = vmatprep.subr.mxu0 %v666
    %1195 = vmatpush1.msra.mxu0 %v665
    %1196 = vmatprep.subr.mxu0 %v670
    %1197 = vmatpush1.msra.mxu0 %v669
    %1198 = vmatprep.subr.mxu0 %v674
    %1199 = vmatpush1.msra.mxu0 %v673
    %1200 = vmatprep.subr.mxu0 %v678
    %1201 = vmatpush1.msra.mxu0 %v677
    %1202 = vmatprep.subr.mxu0 %v682
    %1203 = vmatpush1.msra.mxu0 %v681
    %1204 = vmatprep.subr.mxu0 %v686
    %1205 = vmatpush1.msra.mxu0 %v685
    %1206 = vmatprep.subr.mxu0 0.0
    %1207 = vmatpush1.msra.mxu0 0.0
    %1208 = vmatprep.subr.mxu0 0.0
    %1209 = vmatpush1.msra.mxu0 0.0
    %1210 = vmatprep.subr.mxu0 0.0
    %1211 = vmatpush1.msra.mxu0 0.0
    %1212 = vmatprep.subr.mxu0 0.0
    %1213 = vmatpush1.msra.mxu0 0.0
    %1214 = vmatprep.subr.mxu0 0.0
    %1215 = vmatpush1.msra.mxu0 0.0
    %1216 = vmatprep.subr.mxu0 0.0
    %1217 = vmatpush1.msra.mxu0 0.0
    %1218 = vmatprep.subr.mxu0 0.0
    %1219 = vmatpush1.msra.mxu0 0.0
    %1220 = vmatprep.subr.mxu0 0.0
    %1221 = vmatpush1.msra.mxu0 0.0
    %1222 = vmatprep.subr.mxu0 0.0
    %1223 = vmatpush1.msra.mxu0 0.0
    %1224 = vmatprep.subr.mxu0 0.0
    %1225 = vmatpush1.msra.mxu0 0.0
    %1226 = vmatprep.subr.mxu0 0.0
    %1227 = vmatpush1.msra.mxu0 0.0
    %1228 = vmatprep.subr.mxu0 0.0
    %1229 = vmatpush1.msra.mxu0 0.0
    %1230 = vmatprep.subr.mxu0 0.0
    %1231 = vmatpush1.msra.mxu0 0.0
    %1232 = vmatprep.subr.mxu0 0.0
    %1233 = vmatpush1.msra.mxu0 0.0
    %1234 = vmatprep.subr.mxu0 0.0
    %1235 = vmatpush1.msra.mxu0 0.0
    %1236 = vmatprep.subr.mxu0 0.0
    %1237 = vmatpush1.msra.mxu0 0.0
    %1238 = vmatprep.mubr.f32.mxu0 0.0
    %1239 = vmatmul.mubr.f32.gmra.mrb[0].mxu0 %v1172
    %v1240 = vpop.f32.mrb[0].mxu0
    %v1241 = vadd.f32 0.0, %v1240
    %v1242 = vpop.f32.mrb[0].mxu0
    %v1243 = vadd.f32 0.0, %v1242
    %1244 = vdwg.mxu0
    %1245 = vmatprep.subr.mxu0 %v628
    %1246 = vmatpush1.msra.mxu0 %v627
    %1247 = vmatprep.subr.mxu0 %v632
    %1248 = vmatpush1.msra.mxu0 %v631
    %1249 = vmatprep.subr.mxu0 %v636
    %1250 = vmatpush1.msra.mxu0 %v635
    %1251 = vmatprep.subr.mxu0 %v640
    %1252 = vmatpush1.msra.mxu0 %v639
    %1253 = vmatprep.subr.mxu0 %v644
    %1254 = vmatpush1.msra.mxu0 %v643
    %1255 = vmatprep.subr.mxu0 %v648
    %1256 = vmatpush1.msra.mxu0 %v647
    %1257 = vmatprep.subr.mxu0 %v652
    %1258 = vmatpush1.msra.mxu0 %v651
    %1259 = vmatprep.subr.mxu0 %v656
    %1260 = vmatpush1.msra.mxu0 %v655
    %1261 = vmatprep.subr.mxu0 %v660
    %1262 = vmatpush1.msra.mxu0 %v659
    %1263 = vmatprep.subr.mxu0 %v664
    %1264 = vmatpush1.msra.mxu0 %v663
    %1265 = vmatprep.subr.mxu0 %v668
    %1266 = vmatpush1.msra.mxu0 %v667
    %1267 = vmatprep.subr.mxu0 %v672
    %1268 = vmatpush1.msra.mxu0 %v671
    %1269 = vmatprep.subr.mxu0 %v676
    %1270 = vmatpush1.msra.mxu0 %v675
    %1271 = vmatprep.subr.mxu0 %v680
    %1272 = vmatpush1.msra.mxu0 %v679
    %1273 = vmatprep.subr.mxu0 %v684
    %1274 = vmatpush1.msra.mxu0 %v683
    %1275 = vmatprep.subr.mxu0 %v688
    %1276 = vmatpush1.msra.mxu0 %v687
    %1277 = vmatprep.subr.mxu0 0.0
    %1278 = vmatpush1.msra.mxu0 0.0
    %1279 = vmatprep.subr.mxu0 0.0
    %1280 = vmatpush1.msra.mxu0 0.0
    %1281 = vmatprep.subr.mxu0 0.0
    %1282 = vmatpush1.msra.mxu0 0.0
    %1283 = vmatprep.subr.mxu0 0.0
    %1284 = vmatpush1.msra.mxu0 0.0
    %1285 = vmatprep.subr.mxu0 0.0
    %1286 = vmatpush1.msra.mxu0 0.0
    %1287 = vmatprep.subr.mxu0 0.0
    %1288 = vmatpush1.msra.mxu0 0.0
    %1289 = vmatprep.subr.mxu0 0.0
    %1290 = vmatpush1.msra.mxu0 0.0
    %1291 = vmatprep.subr.mxu0 0.0
    %1292 = vmatpush1.msra.mxu0 0.0
    %1293 = vmatprep.subr.mxu0 0.0
    %1294 = vmatpush1.msra.mxu0 0.0
    %1295 = vmatprep.subr.mxu0 0.0
    %1296 = vmatpush1.msra.mxu0 0.0
    %1297 = vmatprep.subr.mxu0 0.0
    %1298 = vmatpush1.msra.mxu0 0.0
    %1299 = vmatprep.subr.mxu0 0.0
    %1300 = vmatpush1.msra.mxu0 0.0
    %1301 = vmatprep.subr.mxu0 0.0
    %1302 = vmatpush1.msra.mxu0 0.0
    %1303 = vmatprep.subr.mxu0 0.0
    %1304 = vmatpush1.msra.mxu0 0.0
    %1305 = vmatprep.subr.mxu0 0.0
    %1306 = vmatpush1.msra.mxu0 0.0
    %1307 = vmatprep.subr.mxu0 0.0
    %1308 = vmatpush1.msra.mxu0 0.0
    %1309 = vmatprep.mubr.f32.mxu0 0.0
    %1310 = vmatmul.mubr.f32.gmra.mrb[0].mxu0 %v1172
    %v1311 = vpop.f32.mrb[0].mxu0
    %v1312 = vadd.f32 0.0, %v1311
    %v1313 = vpop.f32.mrb[0].mxu0
    %v1314 = vadd.f32 0.0, %v1313
    %1315 = vdwg.mxu0
    %v1320 = vrot.slane %v1241, 4
    %v1321 = vrot.slane %v1243, 4
    %v1322 = vrot.slane %v1312, 4
    %v1323 = vrot.slane %v1314, 4
    %v1328 = vadd.f32 %v321, %v1320
    %v1329 = vadd.f32 %v323, %v1321
    %v1330 = vadd.f32 %v392, %v1322
    %v1331 = vadd.f32 %v394, %v1323
    %v1332 = vxor.u32 %v1328, 2147483648
    %v1333 = vmul.f32 %v1332, 1.442695
    %v1334 = vpow.pop %v1333
    %v1335 = vadd.f32 %v1334, 1.0
    %v1336 = vrcp.pop %v1335
    %v1337 = vmul.f32 1.0, %v1336
    %v1338 = vxor.u32 %v1329, 2147483648
    %v1339 = vmul.f32 %v1338, 1.442695
    %v1340 = vpow.pop %v1339
    %v1341 = vadd.f32 %v1340, 1.0
    %v1342 = vrcp.pop %v1341
    %v1343 = vmul.f32 1.0, %v1342
    %v1344 = vtanh.pop %v1330
    %v1345 = vxor.u32 %v1331, 2147483648
    %v1346 = vmul.f32 %v1345, 1.442695
    %v1347 = vpow.pop %v1346
    %v1348 = vadd.f32 %v1347, 1.0
    %v1349 = vrcp.pop %v1348
    %v1350 = vmul.f32 1.0, %v1349
    %v1352 = vrot.slane %v983, 6
    %v1354 = vmul.f32 %v1343, %v1352
    %v1355 = vmul.f32 %v1337, %v1344
    %v1356 = vadd.f32 %v1354, %v1355
    %v1357 = vtanh.pop %v1356
    %v1358 = vmul.f32 %v1350, %v1357
    %v1360 = vrot.slane %v1170, 2
    %1362 = vmatprep.subr.mxu0 %v690
    %1363 = vmatpush1.msra.mxu0 %v689
    %1364 = vmatprep.subr.mxu0 %v694
    %1365 = vmatpush1.msra.mxu0 %v693
    %1366 = vmatprep.subr.mxu0 %v698
    %1367 = vmatpush1.msra.mxu0 %v697
    %1368 = vmatprep.subr.mxu0 %v702
    %1369 = vmatpush1.msra.mxu0 %v701
    %1370 = vmatprep.subr.mxu0 %v706
    %1371 = vmatpush1.msra.mxu0 %v705
    %1372 = vmatprep.subr.mxu0 %v710
    %1373 = vmatpush1.msra.mxu0 %v709
    %1374 = vmatprep.subr.mxu0 %v714
    %1375 = vmatpush1.msra.mxu0 %v713
    %1376 = vmatprep.subr.mxu0 %v718
    %1377 = vmatpush1.msra.mxu0 %v717
    %1378 = vmatprep.subr.mxu0 %v722
    %1379 = vmatpush1.msra.mxu0 %v721
    %1380 = vmatprep.subr.mxu0 %v726
    %1381 = vmatpush1.msra.mxu0 %v725
    %1382 = vmatprep.subr.mxu0 %v730
    %1383 = vmatpush1.msra.mxu0 %v729
    %1384 = vmatprep.subr.mxu0 %v734
    %1385 = vmatpush1.msra.mxu0 %v733
    %1386 = vmatprep.subr.mxu0 %v738
    %1387 = vmatpush1.msra.mxu0 %v737
    %1388 = vmatprep.subr.mxu0 %v742
    %1389 = vmatpush1.msra.mxu0 %v741
    %1390 = vmatprep.subr.mxu0 %v746
    %1391 = vmatpush1.msra.mxu0 %v745
    %1392 = vmatprep.subr.mxu0 %v750
    %1393 = vmatpush1.msra.mxu0 %v749
    %1394 = vmatprep.subr.mxu0 0.0
    %1395 = vmatpush1.msra.mxu0 0.0
    %1396 = vmatprep.subr.mxu0 0.0
    %1397 = vmatpush1.msra.mxu0 0.0
    %1398 = vmatprep.subr.mxu0 0.0
    %1399 = vmatpush1.msra.mxu0 0.0
    %1400 = vmatprep.subr.mxu0 0.0
    %1401 = vmatpush1.msra.mxu0 0.0
    %1402 = vmatprep.subr.mxu0 0.0
    %1403 = vmatpush1.msra.mxu0 0.0
    %1404 = vmatprep.subr.mxu0 0.0
    %1405 = vmatpush1.msra.mxu0 0.0
    %1406 = vmatprep.subr.mxu0 0.0
    %1407 = vmatpush1.msra.mxu0 0.0
    %1408 = vmatprep.subr.mxu0 0.0
    %1409 = vmatpush1.msra.mxu0 0.0
    %1410 = vmatprep.subr.mxu0 0.0
    %1411 = vmatpush1.msra.mxu0 0.0
    %1412 = vmatprep.subr.mxu0 0.0
    %1413 = vmatpush1.msra.mxu0 0.0
    %1414 = vmatprep.subr.mxu0 0.0
    %1415 = vmatpush1.msra.mxu0 0.0
    %1416 = vmatprep.subr.mxu0 0.0
    %1417 = vmatpush1.msra.mxu0 0.0
    %1418 = vmatprep.subr.mxu0 0.0
    %1419 = vmatpush1.msra.mxu0 0.0
    %1420 = vmatprep.subr.mxu0 0.0
    %1421 = vmatpush1.msra.mxu0 0.0
    %1422 = vmatprep.subr.mxu0 0.0
    %1423 = vmatpush1.msra.mxu0 0.0
    %1424 = vmatprep.subr.mxu0 0.0
    %1425 = vmatpush1.msra.mxu0 0.0
    %1426 = vmatprep.mubr.f32.mxu0 0.0
    %1427 = vmatmul.mubr.f32.gmra.mrb[0].mxu0 %v1360
    %v1428 = vpop.f32.mrb[0].mxu0
    %v1429 = vadd.f32 0.0, %v1428
    %v1430 = vpop.f32.mrb[0].mxu0
    %v1431 = vadd.f32 0.0, %v1430
    %1432 = vdwg.mxu0
    %1433 = vmatprep.subr.mxu0 %v692
    %1434 = vmatpush1.msra.mxu0 %v691
    %1435 = vmatprep.subr.mxu0 %v696
    %1436 = vmatpush1.msra.mxu0 %v695
    %1437 = vmatprep.subr.mxu0 %v700
    %1438 = vmatpush1.msra.mxu0 %v699
    %1439 = vmatprep.subr.mxu0 %v704
    %1440 = vmatpush1.msra.mxu0 %v703
    %1441 = vmatprep.subr.mxu0 %v708
    %1442 = vmatpush1.msra.mxu0 %v707
    %1443 = vmatprep.subr.mxu0 %v712
    %1444 = vmatpush1.msra.mxu0 %v711
    %1445 = vmatprep.subr.mxu0 %v716
    %1446 = vmatpush1.msra.mxu0 %v715
    %1447 = vmatprep.subr.mxu0 %v720
    %1448 = vmatpush1.msra.mxu0 %v719
    %1449 = vmatprep.subr.mxu0 %v724
    %1450 = vmatpush1.msra.mxu0 %v723
    %1451 = vmatprep.subr.mxu0 %v728
    %1452 = vmatpush1.msra.mxu0 %v727
    %1453 = vmatprep.subr.mxu0 %v732
    %1454 = vmatpush1.msra.mxu0 %v731
    %1455 = vmatprep.subr.mxu0 %v736
    %1456 = vmatpush1.msra.mxu0 %v735
    %1457 = vmatprep.subr.mxu0 %v740
    %1458 = vmatpush1.msra.mxu0 %v739
    %1459 = vmatprep.subr.mxu0 %v744
    %1460 = vmatpush1.msra.mxu0 %v743
    %1461 = vmatprep.subr.mxu0 %v748
    %1462 = vmatpush1.msra.mxu0 %v747
    %1463 = vmatprep.subr.mxu0 %v752
    %1464 = vmatpush1.msra.mxu0 %v751
    %1465 = vmatprep.subr.mxu0 0.0
    %1466 = vmatpush1.msra.mxu0 0.0
    %1467 = vmatprep.subr.mxu0 0.0
    %1468 = vmatpush1.msra.mxu0 0.0
    %1469 = vmatprep.subr.mxu0 0.0
    %1470 = vmatpush1.msra.mxu0 0.0
    %1471 = vmatprep.subr.mxu0 0.0
    %1472 = vmatpush1.msra.mxu0 0.0
    %1473 = vmatprep.subr.mxu0 0.0
    %1474 = vmatpush1.msra.mxu0 0.0
    %1475 = vmatprep.subr.mxu0 0.0
    %1476 = vmatpush1.msra.mxu0 0.0
    %1477 = vmatprep.subr.mxu0 0.0
    %1478 = vmatpush1.msra.mxu0 0.0
    %1479 = vmatprep.subr.mxu0 0.0
    %1480 = vmatpush1.msra.mxu0 0.0
    %1481 = vmatprep.subr.mxu0 0.0
    %1482 = vmatpush1.msra.mxu0 0.0
    %1483 = vmatprep.subr.mxu0 0.0
    %1484 = vmatpush1.msra.mxu0 0.0
    %1485 = vmatprep.subr.mxu0 0.0
    %1486 = vmatpush1.msra.mxu0 0.0
    %1487 = vmatprep.subr.mxu0 0.0
    %1488 = vmatpush1.msra.mxu0 0.0
    %1489 = vmatprep.subr.mxu0 0.0
    %1490 = vmatpush1.msra.mxu0 0.0
    %1491 = vmatprep.subr.mxu0 0.0
    %1492 = vmatpush1.msra.mxu0 0.0
    %1493 = vmatprep.subr.mxu0 0.0
    %1494 = vmatpush1.msra.mxu0 0.0
    %1495 = vmatprep.subr.mxu0 0.0
    %1496 = vmatpush1.msra.mxu0 0.0
    %1497 = vmatprep.mubr.f32.mxu0 0.0
    %1498 = vmatmul.mubr.f32.gmra.mrb[0].mxu0 %v1360
    %v1499 = vpop.f32.mrb[0].mxu0
    %v1500 = vadd.f32 0.0, %v1499
    %v1501 = vpop.f32.mrb[0].mxu0
    %v1502 = vadd.f32 0.0, %v1501
    %1503 = vdwg.mxu0
    %v1508 = vrot.slane %v1429, 4
    %v1509 = vrot.slane %v1431, 4
    %v1510 = vrot.slane %v1500, 4
    %v1511 = vrot.slane %v1502, 4
    %v1516 = vadd.f32 %v550, %v1508
    %v1517 = vadd.f32 %v552, %v1509
    %v1518 = vadd.f32 %v621, %v1510
    %v1519 = vadd.f32 %v623, %v1511
    %v1520 = vxor.u32 %v1516, 2147483648
    %v1521 = vmul.f32 %v1520, 1.442695
    %v1522 = vpow.pop %v1521
    %v1523 = vadd.f32 %v1522, 1.0
    %v1524 = vrcp.pop %v1523
    %v1525 = vmul.f32 1.0, %v1524
    %v1526 = vxor.u32 %v1517, 2147483648
    %v1527 = vmul.f32 %v1526, 1.442695
    %v1528 = vpow.pop %v1527
    %v1529 = vadd.f32 %v1528, 1.0
    %v1530 = vrcp.pop %v1529
    %v1531 = vmul.f32 1.0, %v1530
    %v1532 = vtanh.pop %v1518
    %v1533 = vxor.u32 %v1519, 2147483648
    %v1534 = vmul.f32 %v1533, 1.442695
    %v1535 = vpow.pop %v1534
    %v1536 = vadd.f32 %v1535, 1.0
    %v1537 = vrcp.pop %v1536
    %v1538 = vmul.f32 1.0, %v1537
    %v1540 = vrot.slane %v1168, 6
    %v1542 = vmul.f32 %v1531, %v1540
    %v1543 = vmul.f32 %v1525, %v1532
    %v1544 = vadd.f32 %v1542, %v1543
    %v1545 = vtanh.pop %v1544
    %v1546 = vmul.f32 %v1538, %v1545
    %vm1547 = vcmask 1045508
    %v1548 = vsel %vm1547, %v1358, 0.0
    %1549 = vadd.xlane.f32.xlu0 %v1548
    %v1550 = vpop.xlane.xlu0 %1549
    %v1551 = vsel %vm1547, %v1546, 0.0
    %1552 = vadd.xlane.f32.xlu0 %v1551
    %v1553 = vpop.xlane.xlu0 %1552
    %v1554 = vadd.f32 %v1550, %v1553
    %v1555 = vmul.f32 %v1554, 0.00390625
    %v1556 = vsub.f32 %v1358, %v1555
    %v1557 = vsub.f32 %v1546, %v1555
    %v1558 = vmul.f32 %v1556, %v1556
    %v1559 = vsel %vm1547, %v1558, 0.0
    %1560 = vadd.xlane.f32.xlu0 %v1559
    %v1561 = vpop.xlane.xlu0 %1560
    %v1562 = vmul.f32 %v1557, %v1557
    %v1563 = vsel %vm1547, %v1562, 0.0
    %1564 = vadd.xlane.f32.xlu0 %v1563
    %v1565 = vpop.xlane.xlu0 %1564
    %v1566 = vadd.f32 %v1561, %v1565
    %v1567 = vmul.f32 %v1566, 0.00390625
    %v1568 = vadd.f32 %v1567, 1e-05
    %v1569 = vrsqrt.pop %v1568
    %v1570 = vmul.f32 %v1556, %v1569
    %v1571 = vld [vmem:[%s8] sm:$0x1]
    %v1573 = vlaneseq
    %v1574 = vshrl.u32 %v1573, 7
    %v1575 = vsub.s32 0, %v1574
    %v1576 = vrot.slane %v1571, %v1575
    %v1578 = vmul.f32 %v1570, %v1576
    %v1579 = vld [vmem:[%s9] sm:$0x1]
    %v1581 = vlaneseq
    %v1582 = vshrl.u32 %v1581, 7
    %v1583 = vsub.s32 0, %v1582
    %v1584 = vrot.slane %v1579, %v1583
    %v1586 = vadd.f32 %v1578, %v1584
    %v1587 = vmul.f32 %v1557, %v1569
    %v1588 = vld [vmem:[%s10] sm:$0x1]
    %v1590 = vlaneseq
    %v1591 = vshrl.u32 %v1590, 7
    %v1592 = vsub.s32 0, %v1591
    %v1593 = vrot.slane %v1588, %v1592
    %v1595 = vmul.f32 %v1587, %v1593
    %v1596 = vld [vmem:[%s11] sm:$0x1]
    %v1598 = vlaneseq
    %v1599 = vshrl.u32 %v1598, 7
    %v1600 = vsub.s32 0, %v1599
    %v1601 = vrot.slane %v1596, %v1600
    %v1603 = vadd.f32 %v1595, %v1601
    %v1604 = vld [vmem:[#allocation11] sm:$0xff]
    %v1605 = vld [vmem:[#allocation11 + $0x8] sm:$0xff]
    %v1606 = vld [vmem:[#allocation11 + $0x10] sm:$0xff]
    %v1607 = vld [vmem:[#allocation11 + $0x18] sm:$0xff]
    %v1608 = vld [vmem:[#allocation11 + $0x20] sm:$0xff]
    %v1609 = vld [vmem:[#allocation11 + $0x28] sm:$0xff]
    %v1610 = vld [vmem:[#allocation11 + $0x30] sm:$0xff]
    %v1611 = vld [vmem:[#allocation11 + $0x38] sm:$0xff]
    %v1612 = vld [vmem:[#allocation11 + $0x40] sm:$0xff]
    %v1613 = vld [vmem:[#allocation11 + $0x48] sm:$0xff]
    %v1614 = vld [vmem:[#allocation11 + $0x50] sm:$0xff]
    %v1615 = vld [vmem:[#allocation11 + $0x58] sm:$0xff]
    %v1616 = vld [vmem:[#allocation11 + $0x60] sm:$0xff]
    %v1617 = vld [vmem:[#allocation11 + $0x68] sm:$0xff]
    %v1618 = vld [vmem:[#allocation11 + $0x70] sm:$0xff]
    %v1619 = vld [vmem:[#allocation11 + $0x78] sm:$0xff]
    %v1620 = vld [vmem:[#allocation13] sm:$0xff]
    %v1621 = vld [vmem:[#allocation13 + $0x8] sm:$0xff]
    %v1622 = vld [vmem:[#allocation13 + $0x10] sm:$0xff]
    %v1623 = vld [vmem:[#allocation13 + $0x18] sm:$0xff]
    %v1624 = vld [vmem:[#allocation13 + $0x20] sm:$0xff]
    %v1625 = vld [vmem:[#allocation13 + $0x28] sm:$0xff]
    %v1626 = vld [vmem:[#allocation13 + $0x30] sm:$0xff]
    %v1627 = vld [vmem:[#allocation13 + $0x38] sm:$0xff]
    %v1628 = vld [vmem:[#allocation13 + $0x40] sm:$0xff]
    %v1629 = vld [vmem:[#allocation13 + $0x48] sm:$0xff]
    %v1630 = vld [vmem:[#allocation13 + $0x50] sm:$0xff]
    %v1631 = vld [vmem:[#allocation13 + $0x58] sm:$0xff]
    %v1632 = vld [vmem:[#allocation13 + $0x60] sm:$0xff]
    %v1633 = vld [vmem:[#allocation13 + $0x68] sm:$0xff]
    %v1634 = vld [vmem:[#allocation13 + $0x70] sm:$0xff]
    %v1635 = vld [vmem:[#allocation13 + $0x78] sm:$0xff]
    %v1637 = vrot.slane %v1603, 4
    %1639 = vmatprep.subr.mxu0 0.0
    %1640 = vmatpush1.msra.mxu0 %v1620
    %1641 = vmatprep.subr.mxu0 0.0
    %1642 = vmatpush1.msra.mxu0 %v1621
    %1643 = vmatprep.subr.mxu0 0.0
    %1644 = vmatpush1.msra.mxu0 %v1622
    %1645 = vmatprep.subr.mxu0 0.0
    %1646 = vmatpush1.msra.mxu0 %v1623
    %1647 = vmatprep.subr.mxu0 0.0
    %1648 = vmatpush1.msra.mxu0 %v1624
    %1649 = vmatprep.subr.mxu0 0.0
    %1650 = vmatpush1.msra.mxu0 %v1625
    %1651 = vmatprep.subr.mxu0 0.0
    %1652 = vmatpush1.msra.mxu0 %v1626
    %1653 = vmatprep.subr.mxu0 0.0
    %1654 = vmatpush1.msra.mxu0 %v1627
    %1655 = vmatprep.subr.mxu0 0.0
    %1656 = vmatpush1.msra.mxu0 %v1628
    %1657 = vmatprep.subr.mxu0 0.0
    %1658 = vmatpush1.msra.mxu0 %v1629
    %1659 = vmatprep.subr.mxu0 0.0
    %1660 = vmatpush1.msra.mxu0 %v1630
    %1661 = vmatprep.subr.mxu0 0.0
    %1662 = vmatpush1.msra.mxu0 %v1631
    %1663 = vmatprep.subr.mxu0 0.0
    %1664 = vmatpush1.msra.mxu0 %v1632
    %1665 = vmatprep.subr.mxu0 0.0
    %1666 = vmatpush1.msra.mxu0 %v1633
    %1667 = vmatprep.subr.mxu0 0.0
    %1668 = vmatpush1.msra.mxu0 %v1634
    %1669 = vmatprep.subr.mxu0 0.0
    %1670 = vmatpush1.msra.mxu0 %v1635
    %1671 = vmatprep.subr.mxu0 0.0
    %1672 = vmatpush1.msra.mxu0 0.0
    %1673 = vmatprep.subr.mxu0 0.0
    %1674 = vmatpush1.msra.mxu0 0.0
    %1675 = vmatprep.subr.mxu0 0.0
    %1676 = vmatpush1.msra.mxu0 0.0
    %1677 = vmatprep.subr.mxu0 0.0
    %1678 = vmatpush1.msra.mxu0 0.0
    %1679 = vmatprep.subr.mxu0 0.0
    %1680 = vmatpush1.msra.mxu0 0.0
    %1681 = vmatprep.subr.mxu0 0.0
    %1682 = vmatpush1.msra.mxu0 0.0
    %1683 = vmatprep.subr.mxu0 0.0
    %1684 = vmatpush1.msra.mxu0 0.0
    %1685 = vmatprep.subr.mxu0 0.0
    %1686 = vmatpush1.msra.mxu0 0.0
    %1687 = vmatprep.subr.mxu0 0.0
    %1688 = vmatpush1.msra.mxu0 0.0
    %1689 = vmatprep.subr.mxu0 0.0
    %1690 = vmatpush1.msra.mxu0 0.0
    %1691 = vmatprep.subr.mxu0 0.0
    %1692 = vmatpush1.msra.mxu0 0.0
    %1693 = vmatprep.subr.mxu0 0.0
    %1694 = vmatpush1.msra.mxu0 0.0
    %1695 = vmatprep.subr.mxu0 0.0
    %1696 = vmatpush1.msra.mxu0 0.0
    %1697 = vmatprep.subr.mxu0 0.0
    %1698 = vmatpush1.msra.mxu0 0.0
    %1699 = vmatprep.subr.mxu0 0.0
    %1700 = vmatpush1.msra.mxu0 0.0
    %1701 = vmatprep.subr.mxu0 0.0
    %1702 = vmatpush1.msra.mxu0 0.0
    %1703 = vmatprep.mubr.f32.mxu0 0.0
    %1704 = vmatmul.mubr.f32.gmra.mrb[0].mxu0 %v1637
    %v1705 = vpop.f32.mrb[0].mxu0
    %v1706 = vadd.f32 0.0, %v1705
    %v1707 = vpop.f32.mrb[0].mxu0
    %1708 = vdwg.mxu0
    %v1710 = vrot.slane %v1586, 4
    %1712 = vmatprep.subr.mxu0 0.0
    %1713 = vmatpush1.msra.mxu0 %v1604
    %1714 = vmatprep.subr.mxu0 0.0
    %1715 = vmatpush1.msra.mxu0 %v1605
    %1716 = vmatprep.subr.mxu0 0.0
    %1717 = vmatpush1.msra.mxu0 %v1606
    %1718 = vmatprep.subr.mxu0 0.0
    %1719 = vmatpush1.msra.mxu0 %v1607
    %1720 = vmatprep.subr.mxu0 0.0
    %1721 = vmatpush1.msra.mxu0 %v1608
    %1722 = vmatprep.subr.mxu0 0.0
    %1723 = vmatpush1.msra.mxu0 %v1609
    %1724 = vmatprep.subr.mxu0 0.0
    %1725 = vmatpush1.msra.mxu0 %v1610
    %1726 = vmatprep.subr.mxu0 0.0
    %1727 = vmatpush1.msra.mxu0 %v1611
    %1728 = vmatprep.subr.mxu0 0.0
    %1729 = vmatpush1.msra.mxu0 %v1612
    %1730 = vmatprep.subr.mxu0 0.0
    %1731 = vmatpush1.msra.mxu0 %v1613
    %1732 = vmatprep.subr.mxu0 0.0
    %1733 = vmatpush1.msra.mxu0 %v1614
    %1734 = vmatprep.subr.mxu0 0.0
    %1735 = vmatpush1.msra.mxu0 %v1615
    %1736 = vmatprep.subr.mxu0 0.0
    %1737 = vmatpush1.msra.mxu0 %v1616
    %1738 = vmatprep.subr.mxu0 0.0
    %1739 = vmatpush1.msra.mxu0 %v1617
    %1740 = vmatprep.subr.mxu0 0.0
    %1741 = vmatpush1.msra.mxu0 %v1618
    %1742 = vmatprep.subr.mxu0 0.0
    %1743 = vmatpush1.msra.mxu0 %v1619
    %1744 = vmatprep.subr.mxu0 0.0
    %1745 = vmatpush1.msra.mxu0 0.0
    %1746 = vmatprep.subr.mxu0 0.0
    %1747 = vmatpush1.msra.mxu0 0.0
    %1748 = vmatprep.subr.mxu0 0.0
    %1749 = vmatpush1.msra.mxu0 0.0
    %1750 = vmatprep.subr.mxu0 0.0
    %1751 = vmatpush1.msra.mxu0 0.0
    %1752 = vmatprep.subr.mxu0 0.0
    %1753 = vmatpush1.msra.mxu0 0.0
    %1754 = vmatprep.subr.mxu0 0.0
    %1755 = vmatpush1.msra.mxu0 0.0
    %1756 = vmatprep.subr.mxu0 0.0
    %1757 = vmatpush1.msra.mxu0 0.0
    %1758 = vmatprep.subr.mxu0 0.0
    %1759 = vmatpush1.msra.mxu0 0.0
    %1760 = vmatprep.subr.mxu0 0.0
    %1761 = vmatpush1.msra.mxu0 0.0
    %1762 = vmatprep.subr.mxu0 0.0
    %1763 = vmatpush1.msra.mxu0 0.0
    %1764 = vmatprep.subr.mxu0 0.0
    %1765 = vmatpush1.msra.mxu0 0.0
    %1766 = vmatprep.subr.mxu0 0.0
    %1767 = vmatpush1.msra.mxu0 0.0
    %1768 = vmatprep.subr.mxu0 0.0
    %1769 = vmatpush1.msra.mxu0 0.0
    %1770 = vmatprep.subr.mxu0 0.0
    %1771 = vmatpush1.msra.mxu0 0.0
    %1772 = vmatprep.subr.mxu0 0.0
    %1773 = vmatpush1.msra.mxu0 0.0
    %1774 = vmatprep.subr.mxu0 0.0
    %1775 = vmatpush1.msra.mxu0 0.0
    %1776 = vmatprep.mubr.f32.mxu0 0.0
    %1777 = vmatmul.mubr.f32.gmra.mrb[0].mxu0 %v1710
    %v1778 = vpop.f32.mrb[0].mxu0
    %v1779 = vadd.f32 %v1706, %v1778
    %v1780 = vpop.f32.mrb[0].mxu0
    %1781 = vdwg.mxu0
    %v1782 = vld [vmem:[%s14] sm:$0x1]
    %v1784 = vlaneseq
    %v1785 = vshrl.u32 %v1784, 7
    %v1786 = vsub.s32 0, %v1785
    %v1787 = vrot.slane %v1782, %v1786
    %v1789 = vadd.f32 %v1779, %v1787
    %v1790 = vmul.f32 %v1789, 0.5
    %v1791 = vmul.f32 %v1789, 0.70710677
    %v1792 = verf.f32.pop %v1791
    %v1793 = vadd.f32 %v1792, 1.0
    %v1794 = vmul.f32 %v1790, %v1793
    %v1795 = vld [vmem:[#allocation14] sm:$0xff]
    %v1796 = vld [vmem:[#allocation14 + $0x8] sm:$0xff]
    %v1797 = vld [vmem:[#allocation14 + $0x10] sm:$0xff]
    %v1798 = vld [vmem:[#allocation14 + $0x18] sm:$0xff]
    %v1799 = vld [vmem:[#allocation14 + $0x20] sm:$0xff]
    %v1800 = vld [vmem:[#allocation14 + $0x28] sm:$0xff]
    %v1801 = vld [vmem:[#allocation14 + $0x30] sm:$0xff]
    %v1802 = vld [vmem:[#allocation14 + $0x38] sm:$0xff]
    %v1803 = vld [vmem:[#allocation14 + $0x40] sm:$0xff]
    %v1804 = vld [vmem:[#allocation14 + $0x48] sm:$0xff]
    %v1805 = vld [vmem:[#allocation14 + $0x50] sm:$0xff]
    %v1806 = vld [vmem:[#allocation14 + $0x58] sm:$0xff]
    %v1807 = vld [vmem:[#allocation14 + $0x60] sm:$0xff]
    %v1808 = vld [vmem:[#allocation14 + $0x68] sm:$0xff]
    %v1809 = vld [vmem:[#allocation14 + $0x70] sm:$0xff]
    %v1810 = vld [vmem:[#allocation14 + $0x78] sm:$0xff]
    %v1811 = vld [vmem:[%s16] sm:$0x1]
    %v1813 = vlaneseq
    %v1814 = vshrl.u32 %v1813, 7
    %v1815 = vsub.s32 0, %v1814
    %v1816 = vrot.slane %v1811, %v1815
    %1818 = vmatprep.subr.mxu0 0.0
    %1819 = vmatpush1.msra.mxu0 %v1795
    %1820 = vmatprep.subr.mxu0 0.0
    %1821 = vmatpush1.msra.mxu0 %v1796
    %1822 = vmatprep.subr.mxu0 0.0
    %1823 = vmatpush1.msra.mxu0 %v1797
    %1824 = vmatprep.subr.mxu0 0.0
    %1825 = vmatpush1.msra.mxu0 %v1798
    %1826 = vmatprep.subr.mxu0 0.0
    %1827 = vmatpush1.msra.mxu0 %v1799
    %1828 = vmatprep.subr.mxu0 0.0
    %1829 = vmatpush1.msra.mxu0 %v1800
    %1830 = vmatprep.subr.mxu0 0.0
    %1831 = vmatpush1.msra.mxu0 %v1801
    %1832 = vmatprep.subr.mxu0 0.0
    %1833 = vmatpush1.msra.mxu0 %v1802
    %1834 = vmatprep.subr.mxu0 0.0
    %1835 = vmatpush1.msra.mxu0 %v1803
    %1836 = vmatprep.subr.mxu0 0.0
    %1837 = vmatpush1.msra.mxu0 %v1804
    %1838 = vmatprep.subr.mxu0 0.0
    %1839 = vmatpush1.msra.mxu0 %v1805
    %1840 = vmatprep.subr.mxu0 0.0
    %1841 = vmatpush1.msra.mxu0 %v1806
    %1842 = vmatprep.subr.mxu0 0.0
    %1843 = vmatpush1.msra.mxu0 %v1807
    %1844 = vmatprep.subr.mxu0 0.0
    %1845 = vmatpush1.msra.mxu0 %v1808
    %1846 = vmatprep.subr.mxu0 0.0
    %1847 = vmatpush1.msra.mxu0 %v1809
    %1848 = vmatprep.subr.mxu0 0.0
    %1849 = vmatpush1.msra.mxu0 %v1810
    %1850 = vmatprep.subr.mxu0 0.0
    %1851 = vmatpush1.msra.mxu0 0.0
    %1852 = vmatprep.subr.mxu0 0.0
    %1853 = vmatpush1.msra.mxu0 0.0
    %1854 = vmatprep.subr.mxu0 0.0
    %1855 = vmatpush1.msra.mxu0 0.0
    %1856 = vmatprep.subr.mxu0 0.0
    %1857 = vmatpush1.msra.mxu0 0.0
    %1858 = vmatprep.subr.mxu0 0.0
    %1859 = vmatpush1.msra.mxu0 0.0
    %1860 = vmatprep.subr.mxu0 0.0
    %1861 = vmatpush1.msra.mxu0 0.0
    %1862 = vmatprep.subr.mxu0 0.0
    %1863 = vmatpush1.msra.mxu0 0.0
    %1864 = vmatprep.subr.mxu0 0.0
    %1865 = vmatpush1.msra.mxu0 0.0
    %1866 = vmatprep.subr.mxu0 0.0
    %1867 = vmatpush1.msra.mxu0 0.0
    %1868 = vmatprep.subr.mxu0 0.0
    %1869 = vmatpush1.msra.mxu0 0.0
    %1870 = vmatprep.subr.mxu0 0.0
    %1871 = vmatpush1.msra.mxu0 0.0
    %1872 = vmatprep.subr.mxu0 0.0
    %1873 = vmatpush1.msra.mxu0 0.0
    %1874 = vmatprep.subr.mxu0 0.0
    %1875 = vmatpush1.msra.mxu0 0.0
    %1876 = vmatprep.subr.mxu0 0.0
    %1877 = vmatpush1.msra.mxu0 0.0
    %1878 = vmatprep.subr.mxu0 0.0
    %1879 = vmatpush1.msra.mxu0 0.0
    %1880 = vmatprep.subr.mxu0 0.0
    %1881 = vmatpush1.msra.mxu0 0.0
    %1882 = vmatprep.mubr.f32.mxu0 0.0
    %1883 = vmatmul.mubr.f32.gmra.mrb[0].mxu0 %v1794
    %v1884 = vpop.f32.mrb[0].mxu0
    %v1885 = vadd.f32 %v1816, %v1884
    %v1886 = vpop.f32.mrb[0].mxu0
    %1887 = vdwg.mxu0
    %v1890 = vunpack.c.l.s4 1966171168
    %v1891 = vunpack.c.0.s8 %v1890
    %v1892 = vlaneseq
    %v1893 = vshrl.u32 %v1892, 7
    %v1894 = vsub.s32 %v1891, %v1893
    %v1895 = vrot.slane %v1885, %v1894
    %v1896 = vcombine.high %v1895, %v1895
    %v1898 = vunpack.c.l.s4 1966171168
    %v1899 = vunpack.c.0.s8 %v1898
    %v1900 = vlaneseq
    %v1901 = vshrl.u32 %v1900, 7
    %v1902 = vsub.s32 %v1899, %v1901
    %v1903 = vrot.slane %v1895, %v1902
    %v1905 = vunpack.c.l.s4 1966171168
    %v1906 = vunpack.c.0.s8 %v1905
    %v1907 = vlaneseq
    %v1908 = vshrl.u32 %v1907, 7
    %v1909 = vsub.s32 %v1906, %v1908
    %v1910 = vrot.slane %v1896, %v1909
    %v1911 = vld [vmem:[%s17] sm:$0xff]
    %v1912 = vlaneseq
    %v1913 = vshrl.u32 %v1912, 7
    %v1914 = vsub.s32 0, %v1913
    %v1915 = vrot.slane %v1903, %v1914
    %v1916 = vlaneseq
    %v1917 = vshrl.u32 %v1916, 7
    %v1918 = vsub.s32 0, %v1917
    %v1919 = vrot.slane %v1910, %v1918
    %1923 = vset.pattern.permute.xlu0 0
    %1924 = vperm.xlu0 %1923, %v1911
    %v1925 = vpop.permute.xlu0 %1924
    %v1927 = vmul.f32 %v1915, %v1925
    %v1928 = vmul.f32 %v1919, %v1925
    %1929 = vst [vmem:[#allocation16] sm:$0xff] %v1927
    %1930 = vst [vmem:[#allocation16 + $0x8] sm:$0xff] %v1928
    // Predicated region
    $region106: #{tpu_custom_call.1} parent=1 // pred_check
      _
    $region107: #{tpu_custom_call.1} parent=1 // pred_check_branch
      %1932 = sbr.rel (0) target = $region109
    $region108: #{tpu_custom_call.1} parent=1 // pred_region
      %s1934 = ssub.s32 256, 256
      %1935 = vsyncadd [#allocation4], %s1934
      %s1936 = sshll.u32 [#allocation16], 4
      %s1937 = int_to_ptr.vmem [resolvable:$true] %s1936
      %1942 = dma.vmem_to_hbm [thread:$0]  %s1937, 256, %s18, [#allocation4], 128, 128, 8
    $region109: #{tpu_custom_call.1} parent=1 // pred_fallthru
      _
    // Predicated region
    $region110: #{tpu_custom_call.1} parent=1 // pred_check
      _
    $region111: #{tpu_custom_call.1} parent=1 // pred_check_branch
      %1944 = sbr.rel (0) target = $region113
    $region112: #{tpu_custom_call.1} parent=1 // pred_region
      %1945 = dma.done [#allocation4], 256
    $region113: #{tpu_custom_call.1} parent=1 // pred_fallthru
      _
    %1946 = vsyncpa [#allocation3], 1
    %1947 = vsyncpa [#allocation6], 1
    %1948 = vsyncpa [#allocation9], 1
    %1949 = vsyncpa [#allocation12], 1
    %1950 = vsyncpa [#allocation15], 1
    %1951 = vsyncpa [#allocation4], 1

</llo_original>
